<compile_context>
chip_gen: v6e
topology: v6e:2x2x1
jax: 0.10.0
libtpu: 0.0.40
codegen_flags: <defaults>
</compile_context>

<pallas_src>
import functools

import jax
import jax.numpy as jnp
from jax import lax
from jax.experimental import pallas as pl
from jax.experimental.pallas import tpu as pltpu

_LANE = 128
_SUB = 8


def _round8(r):
    return (r + _SUB - 1) // _SUB * _SUB


def _elu(v):
    return jnp.where(v > 0, v, jnp.exp(jnp.minimum(v, 0.0)) - 1.0)


# --------------------------------------------------------------------------- #
# Fused 3-layer kernel: 3 inputs (x, adj_bias, param slab), 2 outputs.
# --------------------------------------------------------------------------- #
def _ppi_kernel(x_ref, bias_ref, p_ref, out_ref, hid_ref, *,
                heads, f_out, heads3, num_classes, channels, num_features, layout):
    n = x_ref.shape[0]
    adj_bias = bias_ref[...]                              # [N, N] f32 additive mask

    def rows(name, r):
        return p_ref[pl.ds(layout[name], r), :]           # static, 8-aligned slab slice

    def gat_block(xin, wc_name, asrc_name, mask_name, fin, h, fo, lin_out):
        """GATConv (h heads) + linear skip: one projection matmul (feats | skip |
        folded att_dst), one att_src matmul, one block-packed aggregation matmul."""
        hf = h * fo
        xb = xin.astype(jnp.bfloat16)
        wcb = rows(wc_name, fin).astype(jnp.bfloat16)                      # [fin, 128]
        z = jnp.dot(xb, wcb, preferred_element_type=jnp.float32)           # [n, 128]
        xw = z[:, :hf]                                                     # projected feats
        skip = z[:, hf:hf + lin_out]                                       # linear skip
        a_dst = z[:, hf + lin_out:hf + lin_out + h]                        # [n, h]
        asrc_w = rows(asrc_name, _round8(h))[:, :fin].astype(jnp.bfloat16)
        a_src_t = lax.dot_general(asrc_w, xb, (((1,), (1,)), ((), ())),
                                  preferred_element_type=jnp.float32)      # [h_pad, n]
        ps = []
        for hh in range(h):                                                # static unroll
            e = a_dst[:, hh:hh + 1] + a_src_t[hh:hh + 1, :]                # e[i,j]=ad[i]+as[j]
            e = jnp.where(e > 0, e, 0.2 * e)                               # LeakyReLU(0.2)
            e = e + adj_bias                                               # mask non-edges
            e = e - jnp.max(e, axis=-1, keepdims=True)
            p = jnp.exp(e)                                                 # masked -> 0 (f32)
            ps.append(p / jnp.sum(p, axis=-1, keepdims=True))              # exact softmax
        p_packed = jnp.concatenate(ps, axis=-1).astype(jnp.bfloat16)       # [n, h*n]
        mask = rows(mask_name, h * n)[:, :hf]                              # block-diag (host)
        rhs = (jnp.concatenate([xw] * h, axis=0) * mask).astype(jnp.bfloat16)  # f32 mul -> bf16
        agg = jnp.dot(p_packed, rhs, preferred_element_type=jnp.float32)   # [n, hf]
        return agg, skip, a_dst

    # ---- layer 1: GATConv(F -> f_out, heads, concat) + lin1, ELU --------------
    agg1, skip1, _ = gat_block(x_ref[...], 'wc1', 'asrc1', 'mask12',
                               num_features, heads, f_out, channels)
    h1 = _elu(agg1 + skip1 + rows('b1', 1)[:, :channels])

    # ---- layer 2 ----------------------------------------------------------------
    agg2, skip2, _ = gat_block(h1, 'wc2', 'asrc2', 'mask12',
                               channels, heads, f_out, channels)
    h2 = _elu(agg2 + skip2 + rows('b2', 1)[:, :channels])
    hid_ref[...] = h2

    # ---- layer 3: heads3 heads, concat=False (mean over heads) + lin3 ------------
    agg3, skip3, adst3 = gat_block(h2, 'wc3', 'asrc3', 'mask3',
                                   channels, heads3, num_classes, num_classes)
    k3 = heads3 * num_classes + num_classes + heads3          # 48 (8-aligned here)
    combined = jnp.concatenate([agg3, skip3, adst3], axis=-1)  # [n, k3]
    fold = rows('fold3', k3).astype(jnp.bfloat16)              # mean + skip + lane placement
    out = jnp.dot(combined.astype(jnp.bfloat16), fold,
                  preferred_element_type=jnp.float32)          # [n, 128] lane-dense
    out_ref[...] = out + rows('b3', 1)


# --------------------------------------------------------------------------- #
# Host-side parameter folding into ONE f32 slab [R, 128]
# --------------------------------------------------------------------------- #
def build_param_slab(p, *, n, heads, out_channels, num_classes, heads3=6):
    hf3 = heads3 * num_classes

    def fold_att(w, att, h, fo):
        fin = w.shape[0]
        return jnp.einsum('fho,ho->fh', w.reshape(fin, h, fo), att)

    def combine(w, lw, adst, h, fo):
        return jnp.concatenate([w, lw, fold_att(w, adst, h, fo)], axis=1)

    def block_mask(h, fo):
        col_head = jnp.arange(h * fo)[None, :] // fo
        row_head = jnp.arange(h * n)[:, None] // n
        return (col_head == row_head).astype(jnp.float32)      # [h*n, h*fo]

    # fold3: rows 0..hf3-1 -> class lane with weight 1/heads3 (mean over heads),
    # rows hf3..hf3+C-1 -> identity (linear skip), trailing rows (a_dst cols) -> 0.
    k3 = hf3 + num_classes + heads3
    fold3 = jnp.zeros((k3, _LANE), jnp.float32)
    r = jnp.arange(hf3)
    fold3 = fold3.at[r, r % num_classes].set(1.0 / heads3)
    rc = jnp.arange(num_classes)
    fold3 = fold3.at[hf3 + rc, rc].set(1.0)

    b3 = jnp.zeros((1, _LANE), jnp.float32).at[:, :num_classes].set(p['gb3'] + p['lb3'])

    entries = [
        ('wc1', combine(p['w1'], p['lw1'], p['adst1'], heads, out_channels)),
        ('asrc1', fold_att(p['w1'], p['asrc1'], heads, out_channels).T),
        ('b1', p['gb1'] + p['lb1']),
        ('wc2', combine(p['w2'], p['lw2'], p['adst2'], heads, out_channels)),
        ('asrc2', fold_att(p['w2'], p['asrc2'], heads, out_channels).T),
        ('b2', p['gb2'] + p['lb2']),
        ('wc3', combine(p['w3'], p['lw3'], p['adst3'], heads3, num_classes)),
        ('asrc3', fold_att(p['w3'], p['asrc3'], heads3, num_classes).T),
        ('b3', b3),
        ('mask12', block_mask(heads, out_channels)),
        ('mask3', block_mask(heads3, num_classes)),
        ('fold3', fold3),
    ]
    layout, blocks, row = {}, [], 0
    for name, arr in entries:
        arr = jnp.asarray(arr, jnp.float32)
        pr = _round8(arr.shape[0])
        blk = jnp.zeros((pr, _LANE), jnp.float32).at[:arr.shape[0], :arr.shape[1]].set(arr)
        layout[name] = row
        blocks.append(blk)
        row += pr
    return jnp.concatenate(blocks, axis=0), layout


def build_adjacency(edge_index, n):
    """Dense adjacency adj[dst, src] = 1 for every edge src->dst plus self-loops
    (PyG GATConv add_self_loops default)."""
    idx = jnp.arange(n, dtype=edge_index.dtype)
    src = jnp.concatenate([edge_index[0], idx])
    dst = jnp.concatenate([edge_index[1], idx])
    return jnp.zeros((n, n), jnp.float32).at[dst, src].set(1.0)


def ppi_forward(x, adj_bias, slab, layout, *, heads, out_channels, num_classes, heads3=6):
    n, num_features = x.shape
    channels = heads * out_channels
    kernel = functools.partial(
        _ppi_kernel, heads=heads, f_out=out_channels, heads3=heads3,
        num_classes=num_classes, channels=channels, num_features=num_features,
        layout=layout)
    vmem = pl.BlockSpec(memory_space=pltpu.MemorySpace.VMEM)   # whole-array blocks (small N)
    out_pad, hid = pl.pallas_call(
        kernel,
        out_shape=(jax.ShapeDtypeStruct((n, _LANE), jnp.float32),
                   jax.ShapeDtypeStruct((n, channels), jnp.float32)),
        in_specs=[vmem, vmem, vmem],
        out_specs=(vmem, vmem),
    )(x, adj_bias, slab)
    return out_pad[:, :num_classes], hid


# --------------------------------------------------------------------------- #
# Parameters + pure-JAX reference (same forward semantics, full f32)
# --------------------------------------------------------------------------- #
def init_params(key, num_features, out_channels, heads, num_classes):
    channels = heads * out_channels
    ks = jax.random.split(key, 18)

    def nrm(k, shape, scale=0.1):
        return (scale * jax.random.normal(k, shape)).astype(jnp.float32)

    p = {}
    p['w1'] = nrm(ks[0], (num_features, channels))
    p['asrc1'] = nrm(ks[1], (heads, out_channels))
    p['adst1'] = nrm(ks[2], (heads, out_channels))
    p['gb1'] = nrm(ks[3], (1, channels))
    p['lw1'] = nrm(ks[4], (num_features, channels))
    p['lb1'] = nrm(ks[5], (1, channels))
    p['w2'] = nrm(ks[6], (channels, channels))
    p['asrc2'] = nrm(ks[7], (heads, out_channels))
    p['adst2'] = nrm(ks[8], (heads, out_channels))
    p['gb2'] = nrm(ks[9], (1, channels))
    p['lw2'] = nrm(ks[10], (channels, channels))
    p['lb2'] = nrm(ks[11], (1, channels))
    p['w3'] = nrm(ks[12], (channels, 6 * num_classes))
    p['asrc3'] = nrm(ks[13], (6, num_classes))
    p['adst3'] = nrm(ks[14], (6, num_classes))
    p['gb3'] = nrm(ks[15], (1, num_classes))
    p['lw3'] = nrm(ks[16], (channels, num_classes))
    p['lb3'] = nrm(ks[17], (1, num_classes))
    return p


def _reference_forward(p, x, adj, *, heads, out_channels, num_classes):
    def gat(xin, w, asrc, adst, gb, h, fo, concat):
        xw = xin @ w
        outs = []
        for i in range(h):
            xh = xw[:, i * fo:(i + 1) * fo]
            a_s = xh @ asrc[i]
            a_d = xh @ adst[i]
            e = a_d[:, None] + a_s[None, :]
            e = jnp.where(e > 0, e, 0.2 * e)
            e = jnp.where(adj > 0, e, -1e9)
            pmat = jax.nn.softmax(e, axis=-1)
            outs.append(pmat @ xh)
        g = jnp.concatenate(outs, axis=-1) if concat else sum(outs) / h
        return g + gb

    h1 = _elu(gat(x, p['w1'], p['asrc1'], p['adst1'], p['gb1'], heads, out_channels, True)
              + x @ p['lw1'] + p['lb1'])
    h2 = _elu(gat(h1, p['w2'], p['asrc2'], p['adst2'], p['gb2'], heads, out_channels, True)
              + h1 @ p['lw2'] + p['lb2'])
    out = (gat(h2, p['w3'], p['asrc3'], p['adst3'], p['gb3'], 6, num_classes, False)
           + h2 @ p['lw3'] + p['lb3'])
    return out, h2


# --------------------------------------------------------------------------- #
if __name__ == "__main__":
    # num_features = 32, attention_out_channels = 8, multi_head = 4, num_classes = 6
    N = 16
    NUM_FEATURES = 32
    OUT_CHANNELS = 8
    HEADS = 4
    NUM_CLASSES = 6

    key = jax.random.PRNGKey(0)
    k_x, k_e, k_p = jax.random.split(key, 3)

    x = jax.random.normal(k_x, (N, NUM_FEATURES), dtype=jnp.float32)

    # Deterministic edge set: bidirectional ring + 16 random edges -> edge_index [2, 48]
    idx = jnp.arange(N, dtype=jnp.int32)
    ring_src = jnp.concatenate([idx, (idx + 1) % N])
    ring_dst = jnp.concatenate([(idx + 1) % N, idx])
    rnd = jax.random.randint(k_e, (2, 16), 0, N, dtype=jnp.int32)
    edge_index = jnp.stack([jnp.concatenate([ring_src, rnd[0]]),
                            jnp.concatenate([ring_dst, rnd[1]])], axis=0)

    params = init_params(k_p, NUM_FEATURES, OUT_CHANNELS, HEADS, NUM_CLASSES)
    slab, layout = build_param_slab(params, n=N, heads=HEADS,
                                    out_channels=OUT_CHANNELS, num_classes=NUM_CLASSES)
    adj = build_adjacency(edge_index, N)
    adj_bias = jnp.where(adj > 0, jnp.float32(0.0), jnp.float32(-1e9))

    out, hidden = ppi_forward(x, adj_bias, slab, layout, heads=HEADS,
                              out_channels=OUT_CHANNELS, num_classes=NUM_CLASSES)
    out = jax.block_until_ready(out)
    hidden = jax.block_until_ready(hidden)

    assert out.shape == (N, NUM_CLASSES), out.shape
    assert hidden.shape == (N, HEADS * OUT_CHANNELS), hidden.shape
    assert bool(jnp.all(jnp.isfinite(out))) and bool(jnp.all(jnp.isfinite(hidden)))

    # Cross-check against a full-f32 pure-JAX reference of the same forward pass
    # (kernel uses bf16 matmul operands with f32 accumulation, hence the tolerance).
    ref_out, ref_hidden = _reference_forward(
        params, x, adj, heads=HEADS, out_channels=OUT_CHANNELS, num_classes=NUM_CLASSES)
    assert float(jnp.max(jnp.abs(out - ref_out))) < 1e-1
    assert float(jnp.max(jnp.abs(hidden - ref_hidden))) < 1e-1

    print("KERNEL_OK")
</pallas_src>

<mosaic_0001>
module attributes {stable_mosaic.version = 11 : i64} {
  func.func @_ppi_kernel(%arg0: memref<16x32xf32, #tpu.memory_space<vmem>>, %arg1: memref<16x16xf32, #tpu.memory_space<vmem>>, %arg2: memref<352x128xf32, #tpu.memory_space<vmem>>, %arg3: memref<16x128xf32, #tpu.memory_space<vmem>>, %arg4: memref<16x32xf32, #tpu.memory_space<vmem>>) attributes {dimension_semantics = [], scalar_prefetch = 0 : i64, scratch_operands = 0 : i64, tpu.core_type = #tpu.core_type<tc>} {
    %c0 = arith.constant 0 : index
    %c0_0 = arith.constant 0 : index
    %0 = vector.load %arg1[%c0, %c0_0] : memref<16x16xf32, #tpu.memory_space<vmem>>, vector<16x16xf32>
    %c0_1 = arith.constant 0 : index
    %c0_2 = arith.constant 0 : index
    %1 = vector.load %arg0[%c0_1, %c0_2] : memref<16x32xf32, #tpu.memory_space<vmem>>, vector<16x32xf32>
    %2 = arith.truncf %1 : vector<16x32xf32> to vector<16x32xbf16>
    %c0_3 = arith.constant 0 : index
    %c0_4 = arith.constant 0 : index
    %3 = vector.load %arg2[%c0_3, %c0_4] : memref<352x128xf32, #tpu.memory_space<vmem>>, vector<32x128xf32>
    %4 = arith.truncf %3 : vector<32x128xf32> to vector<32x128xbf16>
    %cst = arith.constant dense<0.000000e+00> : vector<16x128xf32>
    %5 = tpu.matmul %2, %4, %cst {dimension_numbers = #tpu.dot_dimension_numbers<[1], [0], [0], [1], [0, 0, 1, 1], [], []>} : vector<16x32xbf16>, vector<32x128xbf16>, vector<16x128xf32> -> vector<16x128xf32>
    %6 = vector.extract_strided_slice %5 {offsets = [0, 0], sizes = [16, 32], strides = [1, 1]} : vector<16x128xf32> to vector<16x32xf32>
    %7 = vector.extract_strided_slice %5 {offsets = [0, 32], sizes = [16, 32], strides = [1, 1]} : vector<16x128xf32> to vector<16x32xf32>
    %8 = vector.extract_strided_slice %5 {offsets = [0, 64], sizes = [16, 4], strides = [1, 1]} : vector<16x128xf32> to vector<16x4xf32>
    %c32 = arith.constant 32 : index
    %c0_5 = arith.constant 0 : index
    %9 = vector.load %arg2[%c32, %c0_5] : memref<352x128xf32, #tpu.memory_space<vmem>>, vector<8x128xf32>
    %10 = vector.extract_strided_slice %9 {offsets = [0, 0], sizes = [8, 32], strides = [1, 1]} : vector<8x128xf32> to vector<8x32xf32>
    %11 = arith.truncf %10 : vector<8x32xf32> to vector<8x32xbf16>
    %cst_6 = arith.constant dense<0.000000e+00> : vector<8x16xf32>
    %12 = tpu.matmul %11, %2, %cst_6 {dimension_numbers = #tpu.dot_dimension_numbers<[1], [1], [0], [0], [0, 0, 1, 0], [], []>} : vector<8x32xbf16>, vector<16x32xbf16>, vector<8x16xf32> -> vector<8x16xf32>
    %13 = vector.extract_strided_slice %8 {offsets = [0, 0], sizes = [16, 1], strides = [1, 1]} : vector<16x4xf32> to vector<16x1xf32>
    %14 = vector.extract_strided_slice %12 {offsets = [0, 0], sizes = [1, 16], strides = [1, 1]} : vector<8x16xf32> to vector<1x16xf32>
    %15 = vector.broadcast %13 : vector<16x1xf32> to vector<16x16xf32>
    %16 = vector.broadcast %14 : vector<1x16xf32> to vector<16x16xf32>
    %17 = arith.addf %15, %16 : vector<16x16xf32>
    %cst_7 = arith.constant 0.000000e+00 : f32
    %18 = vector.broadcast %cst_7 : f32 to vector<16x16xf32>
    %19 = arith.cmpf ogt, %17, %18 : vector<16x16xf32>
    %cst_8 = arith.constant 2.000000e-01 : f32
    %20 = vector.broadcast %cst_8 : f32 to vector<16x16xf32>
    %21 = arith.mulf %20, %17 : vector<16x16xf32>
    %22 = arith.select %19, %17, %21 : vector<16x16xi1>, vector<16x16xf32>
    %23 = arith.addf %22, %0 : vector<16x16xf32>
    %cst_9 = arith.constant dense<0xFF800000> : vector<16xf32>
    %24 = vector.multi_reduction <maximumf>, %23, %cst_9 [1] : vector<16x16xf32> to vector<16xf32>
    %25 = vector.shape_cast %24 : vector<16xf32> to vector<16x1xf32>
    %26 = vector.broadcast %25 : vector<16x1xf32> to vector<16x16xf32>
    %27 = arith.subf %23, %26 : vector<16x16xf32>
    %28 = math.exp %27 : vector<16x16xf32>
    %cst_10 = arith.constant dense<0.000000e+00> : vector<16xf32>
    %29 = vector.multi_reduction <add>, %28, %cst_10 [1] : vector<16x16xf32> to vector<16xf32>
    %30 = vector.shape_cast %29 : vector<16xf32> to vector<16x1xf32>
    %31 = vector.broadcast %30 : vector<16x1xf32> to vector<16x16xf32>
    %32 = arith.divf %28, %31 : vector<16x16xf32>
    %33 = vector.extract_strided_slice %8 {offsets = [0, 1], sizes = [16, 1], strides = [1, 1]} : vector<16x4xf32> to vector<16x1xf32>
    %34 = vector.extract_strided_slice %12 {offsets = [1, 0], sizes = [1, 16], strides = [1, 1]} : vector<8x16xf32> to vector<1x16xf32>
    %35 = vector.broadcast %33 : vector<16x1xf32> to vector<16x16xf32>
    %36 = vector.broadcast %34 : vector<1x16xf32> to vector<16x16xf32>
    %37 = arith.addf %35, %36 : vector<16x16xf32>
    %cst_11 = arith.constant 0.000000e+00 : f32
    %38 = vector.broadcast %cst_11 : f32 to vector<16x16xf32>
    %39 = arith.cmpf ogt, %37, %38 : vector<16x16xf32>
    %cst_12 = arith.constant 2.000000e-01 : f32
    %40 = vector.broadcast %cst_12 : f32 to vector<16x16xf32>
    %41 = arith.mulf %40, %37 : vector<16x16xf32>
    %42 = arith.select %39, %37, %41 : vector<16x16xi1>, vector<16x16xf32>
    %43 = arith.addf %42, %0 : vector<16x16xf32>
    %cst_13 = arith.constant dense<0xFF800000> : vector<16xf32>
    %44 = vector.multi_reduction <maximumf>, %43, %cst_13 [1] : vector<16x16xf32> to vector<16xf32>
    %45 = vector.shape_cast %44 : vector<16xf32> to vector<16x1xf32>
    %46 = vector.broadcast %45 : vector<16x1xf32> to vector<16x16xf32>
    %47 = arith.subf %43, %46 : vector<16x16xf32>
    %48 = math.exp %47 : vector<16x16xf32>
    %cst_14 = arith.constant dense<0.000000e+00> : vector<16xf32>
    %49 = vector.multi_reduction <add>, %48, %cst_14 [1] : vector<16x16xf32> to vector<16xf32>
    %50 = vector.shape_cast %49 : vector<16xf32> to vector<16x1xf32>
    %51 = vector.broadcast %50 : vector<16x1xf32> to vector<16x16xf32>
    %52 = arith.divf %48, %51 : vector<16x16xf32>
    %53 = vector.extract_strided_slice %8 {offsets = [0, 2], sizes = [16, 1], strides = [1, 1]} : vector<16x4xf32> to vector<16x1xf32>
    %54 = vector.extract_strided_slice %12 {offsets = [2, 0], sizes = [1, 16], strides = [1, 1]} : vector<8x16xf32> to vector<1x16xf32>
    %55 = vector.broadcast %53 : vector<16x1xf32> to vector<16x16xf32>
    %56 = vector.broadcast %54 : vector<1x16xf32> to vector<16x16xf32>
    %57 = arith.addf %55, %56 : vector<16x16xf32>
    %cst_15 = arith.constant 0.000000e+00 : f32
    %58 = vector.broadcast %cst_15 : f32 to vector<16x16xf32>
    %59 = arith.cmpf ogt, %57, %58 : vector<16x16xf32>
    %cst_16 = arith.constant 2.000000e-01 : f32
    %60 = vector.broadcast %cst_16 : f32 to vector<16x16xf32>
    %61 = arith.mulf %60, %57 : vector<16x16xf32>
    %62 = arith.select %59, %57, %61 : vector<16x16xi1>, vector<16x16xf32>
    %63 = arith.addf %62, %0 : vector<16x16xf32>
    %cst_17 = arith.constant dense<0xFF800000> : vector<16xf32>
    %64 = vector.multi_reduction <maximumf>, %63, %cst_17 [1] : vector<16x16xf32> to vector<16xf32>
    %65 = vector.shape_cast %64 : vector<16xf32> to vector<16x1xf32>
    %66 = vector.broadcast %65 : vector<16x1xf32> to vector<16x16xf32>
    %67 = arith.subf %63, %66 : vector<16x16xf32>
    %68 = math.exp %67 : vector<16x16xf32>
    %cst_18 = arith.constant dense<0.000000e+00> : vector<16xf32>
    %69 = vector.multi_reduction <add>, %68, %cst_18 [1] : vector<16x16xf32> to vector<16xf32>
    %70 = vector.shape_cast %69 : vector<16xf32> to vector<16x1xf32>
    %71 = vector.broadcast %70 : vector<16x1xf32> to vector<16x16xf32>
    %72 = arith.divf %68, %71 : vector<16x16xf32>
    %73 = vector.extract_strided_slice %8 {offsets = [0, 3], sizes = [16, 1], strides = [1, 1]} : vector<16x4xf32> to vector<16x1xf32>
    %74 = vector.extract_strided_slice %12 {offsets = [3, 0], sizes = [1, 16], strides = [1, 1]} : vector<8x16xf32> to vector<1x16xf32>
    %75 = vector.broadcast %73 : vector<16x1xf32> to vector<16x16xf32>
    %76 = vector.broadcast %74 : vector<1x16xf32> to vector<16x16xf32>
    %77 = arith.addf %75, %76 : vector<16x16xf32>
    %cst_19 = arith.constant 0.000000e+00 : f32
    %78 = vector.broadcast %cst_19 : f32 to vector<16x16xf32>
    %79 = arith.cmpf ogt, %77, %78 : vector<16x16xf32>
    %cst_20 = arith.constant 2.000000e-01 : f32
    %80 = vector.broadcast %cst_20 : f32 to vector<16x16xf32>
    %81 = arith.mulf %80, %77 : vector<16x16xf32>
    %82 = arith.select %79, %77, %81 : vector<16x16xi1>, vector<16x16xf32>
    %83 = arith.addf %82, %0 : vector<16x16xf32>
    %cst_21 = arith.constant dense<0xFF800000> : vector<16xf32>
    %84 = vector.multi_reduction <maximumf>, %83, %cst_21 [1] : vector<16x16xf32> to vector<16xf32>
    %85 = vector.shape_cast %84 : vector<16xf32> to vector<16x1xf32>
    %86 = vector.broadcast %85 : vector<16x1xf32> to vector<16x16xf32>
    %87 = arith.subf %83, %86 : vector<16x16xf32>
    %88 = math.exp %87 : vector<16x16xf32>
    %cst_22 = arith.constant dense<0.000000e+00> : vector<16xf32>
    %89 = vector.multi_reduction <add>, %88, %cst_22 [1] : vector<16x16xf32> to vector<16xf32>
    %90 = vector.shape_cast %89 : vector<16xf32> to vector<16x1xf32>
    %91 = vector.broadcast %90 : vector<16x1xf32> to vector<16x16xf32>
    %92 = arith.divf %88, %91 : vector<16x16xf32>
    %93 = tpu.concatenate %32, %52, %72, %92 in 1 : vector<16x16xf32>, vector<16x16xf32>, vector<16x16xf32>, vector<16x16xf32> -> vector<16x64xf32>
    %94 = arith.truncf %93 : vector<16x64xf32> to vector<16x64xbf16>
    %c144 = arith.constant 144 : index
    %c0_23 = arith.constant 0 : index
    %95 = vector.load %arg2[%c144, %c0_23] : memref<352x128xf32, #tpu.memory_space<vmem>>, vector<64x128xf32>
    %96 = vector.extract_strided_slice %95 {offsets = [0, 0], sizes = [64, 32], strides = [1, 1]} : vector<64x128xf32> to vector<64x32xf32>
    %97 = tpu.concatenate %6, %6, %6, %6 in 0 : vector<16x32xf32>, vector<16x32xf32>, vector<16x32xf32>, vector<16x32xf32> -> vector<64x32xf32>
    %98 = arith.mulf %97, %96 : vector<64x32xf32>
    %99 = arith.truncf %98 : vector<64x32xf32> to vector<64x32xbf16>
    %cst_24 = arith.constant dense<0.000000e+00> : vector<16x32xf32>
    %100 = tpu.matmul %94, %99, %cst_24 {dimension_numbers = #tpu.dot_dimension_numbers<[1], [0], [0], [1], [0, 0, 1, 1], [], []>} : vector<16x64xbf16>, vector<64x32xbf16>, vector<16x32xf32> -> vector<16x32xf32>
    %101 = arith.addf %100, %7 : vector<16x32xf32>
    %c40 = arith.constant 40 : index
    %c0_25 = arith.constant 0 : index
    %102 = vector.load %arg2[%c40, %c0_25] : memref<352x128xf32, #tpu.memory_space<vmem>>, vector<1x128xf32>
    %103 = vector.extract_strided_slice %102 {offsets = [0, 0], sizes = [1, 32], strides = [1, 1]} : vector<1x128xf32> to vector<1x32xf32>
    %104 = vector.broadcast %103 : vector<1x32xf32> to vector<16x32xf32>
    %105 = arith.addf %101, %104 : vector<16x32xf32>
    %cst_26 = arith.constant 0.000000e+00 : f32
    %106 = vector.broadcast %cst_26 : f32 to vector<16x32xf32>
    %107 = arith.cmpf ogt, %105, %106 : vector<16x32xf32>
    %cst_27 = arith.constant 0.000000e+00 : f32
    %108 = vector.broadcast %cst_27 : f32 to vector<16x32xf32>
    %109 = arith.minimumf %105, %108 : vector<16x32xf32>
    %110 = math.exp %109 : vector<16x32xf32>
    %cst_28 = arith.constant 1.000000e+00 : f32
    %111 = vector.broadcast %cst_28 : f32 to vector<16x32xf32>
    %112 = arith.subf %110, %111 : vector<16x32xf32>
    %113 = arith.select %107, %105, %112 : vector<16x32xi1>, vector<16x32xf32>
    %114 = arith.truncf %113 : vector<16x32xf32> to vector<16x32xbf16>
    %c48 = arith.constant 48 : index
    %c0_29 = arith.constant 0 : index
    %115 = vector.load %arg2[%c48, %c0_29] : memref<352x128xf32, #tpu.memory_space<vmem>>, vector<32x128xf32>
    %116 = arith.truncf %115 : vector<32x128xf32> to vector<32x128xbf16>
    %cst_30 = arith.constant dense<0.000000e+00> : vector<16x128xf32>
    %117 = tpu.matmul %114, %116, %cst_30 {dimension_numbers = #tpu.dot_dimension_numbers<[1], [0], [0], [1], [0, 0, 1, 1], [], []>} : vector<16x32xbf16>, vector<32x128xbf16>, vector<16x128xf32> -> vector<16x128xf32>
    %118 = vector.extract_strided_slice %117 {offsets = [0, 0], sizes = [16, 32], strides = [1, 1]} : vector<16x128xf32> to vector<16x32xf32>
    %119 = vector.extract_strided_slice %117 {offsets = [0, 32], sizes = [16, 32], strides = [1, 1]} : vector<16x128xf32> to vector<16x32xf32>
    %120 = vector.extract_strided_slice %117 {offsets = [0, 64], sizes = [16, 4], strides = [1, 1]} : vector<16x128xf32> to vector<16x4xf32>
    %c80 = arith.constant 80 : index
    %c0_31 = arith.constant 0 : index
    %121 = vector.load %arg2[%c80, %c0_31] : memref<352x128xf32, #tpu.memory_space<vmem>>, vector<8x128xf32>
    %122 = vector.extract_strided_slice %121 {offsets = [0, 0], sizes = [8, 32], strides = [1, 1]} : vector<8x128xf32> to vector<8x32xf32>
    %123 = arith.truncf %122 : vector<8x32xf32> to vector<8x32xbf16>
    %cst_32 = arith.constant dense<0.000000e+00> : vector<8x16xf32>
    %124 = tpu.matmul %123, %114, %cst_32 {dimension_numbers = #tpu.dot_dimension_numbers<[1], [1], [0], [0], [0, 0, 1, 0], [], []>} : vector<8x32xbf16>, vector<16x32xbf16>, vector<8x16xf32> -> vector<8x16xf32>
    %125 = vector.extract_strided_slice %120 {offsets = [0, 0], sizes = [16, 1], strides = [1, 1]} : vector<16x4xf32> to vector<16x1xf32>
    %126 = vector.extract_strided_slice %124 {offsets = [0, 0], sizes = [1, 16], strides = [1, 1]} : vector<8x16xf32> to vector<1x16xf32>
    %127 = vector.broadcast %125 : vector<16x1xf32> to vector<16x16xf32>
    %128 = vector.broadcast %126 : vector<1x16xf32> to vector<16x16xf32>
    %129 = arith.addf %127, %128 : vector<16x16xf32>
    %cst_33 = arith.constant 0.000000e+00 : f32
    %130 = vector.broadcast %cst_33 : f32 to vector<16x16xf32>
    %131 = arith.cmpf ogt, %129, %130 : vector<16x16xf32>
    %cst_34 = arith.constant 2.000000e-01 : f32
    %132 = vector.broadcast %cst_34 : f32 to vector<16x16xf32>
    %133 = arith.mulf %132, %129 : vector<16x16xf32>
    %134 = arith.select %131, %129, %133 : vector<16x16xi1>, vector<16x16xf32>
    %135 = arith.addf %134, %0 : vector<16x16xf32>
    %cst_35 = arith.constant dense<0xFF800000> : vector<16xf32>
    %136 = vector.multi_reduction <maximumf>, %135, %cst_35 [1] : vector<16x16xf32> to vector<16xf32>
    %137 = vector.shape_cast %136 : vector<16xf32> to vector<16x1xf32>
    %138 = vector.broadcast %137 : vector<16x1xf32> to vector<16x16xf32>
    %139 = arith.subf %135, %138 : vector<16x16xf32>
    %140 = math.exp %139 : vector<16x16xf32>
    %cst_36 = arith.constant dense<0.000000e+00> : vector<16xf32>
    %141 = vector.multi_reduction <add>, %140, %cst_36 [1] : vector<16x16xf32> to vector<16xf32>
    %142 = vector.shape_cast %141 : vector<16xf32> to vector<16x1xf32>
    %143 = vector.broadcast %142 : vector<16x1xf32> to vector<16x16xf32>
    %144 = arith.divf %140, %143 : vector<16x16xf32>
    %145 = vector.extract_strided_slice %120 {offsets = [0, 1], sizes = [16, 1], strides = [1, 1]} : vector<16x4xf32> to vector<16x1xf32>
    %146 = vector.extract_strided_slice %124 {offsets = [1, 0], sizes = [1, 16], strides = [1, 1]} : vector<8x16xf32> to vector<1x16xf32>
    %147 = vector.broadcast %145 : vector<16x1xf32> to vector<16x16xf32>
    %148 = vector.broadcast %146 : vector<1x16xf32> to vector<16x16xf32>
    %149 = arith.addf %147, %148 : vector<16x16xf32>
    %cst_37 = arith.constant 0.000000e+00 : f32
    %150 = vector.broadcast %cst_37 : f32 to vector<16x16xf32>
    %151 = arith.cmpf ogt, %149, %150 : vector<16x16xf32>
    %cst_38 = arith.constant 2.000000e-01 : f32
    %152 = vector.broadcast %cst_38 : f32 to vector<16x16xf32>
    %153 = arith.mulf %152, %149 : vector<16x16xf32>
    %154 = arith.select %151, %149, %153 : vector<16x16xi1>, vector<16x16xf32>
    %155 = arith.addf %154, %0 : vector<16x16xf32>
    %cst_39 = arith.constant dense<0xFF800000> : vector<16xf32>
    %156 = vector.multi_reduction <maximumf>, %155, %cst_39 [1] : vector<16x16xf32> to vector<16xf32>
    %157 = vector.shape_cast %156 : vector<16xf32> to vector<16x1xf32>
    %158 = vector.broadcast %157 : vector<16x1xf32> to vector<16x16xf32>
    %159 = arith.subf %155, %158 : vector<16x16xf32>
    %160 = math.exp %159 : vector<16x16xf32>
    %cst_40 = arith.constant dense<0.000000e+00> : vector<16xf32>
    %161 = vector.multi_reduction <add>, %160, %cst_40 [1] : vector<16x16xf32> to vector<16xf32>
    %162 = vector.shape_cast %161 : vector<16xf32> to vector<16x1xf32>
    %163 = vector.broadcast %162 : vector<16x1xf32> to vector<16x16xf32>
    %164 = arith.divf %160, %163 : vector<16x16xf32>
    %165 = vector.extract_strided_slice %120 {offsets = [0, 2], sizes = [16, 1], strides = [1, 1]} : vector<16x4xf32> to vector<16x1xf32>
    %166 = vector.extract_strided_slice %124 {offsets = [2, 0], sizes = [1, 16], strides = [1, 1]} : vector<8x16xf32> to vector<1x16xf32>
    %167 = vector.broadcast %165 : vector<16x1xf32> to vector<16x16xf32>
    %168 = vector.broadcast %166 : vector<1x16xf32> to vector<16x16xf32>
    %169 = arith.addf %167, %168 : vector<16x16xf32>
    %cst_41 = arith.constant 0.000000e+00 : f32
    %170 = vector.broadcast %cst_41 : f32 to vector<16x16xf32>
    %171 = arith.cmpf ogt, %169, %170 : vector<16x16xf32>
    %cst_42 = arith.constant 2.000000e-01 : f32
    %172 = vector.broadcast %cst_42 : f32 to vector<16x16xf32>
    %173 = arith.mulf %172, %169 : vector<16x16xf32>
    %174 = arith.select %171, %169, %173 : vector<16x16xi1>, vector<16x16xf32>
    %175 = arith.addf %174, %0 : vector<16x16xf32>
    %cst_43 = arith.constant dense<0xFF800000> : vector<16xf32>
    %176 = vector.multi_reduction <maximumf>, %175, %cst_43 [1] : vector<16x16xf32> to vector<16xf32>
    %177 = vector.shape_cast %176 : vector<16xf32> to vector<16x1xf32>
    %178 = vector.broadcast %177 : vector<16x1xf32> to vector<16x16xf32>
    %179 = arith.subf %175, %178 : vector<16x16xf32>
    %180 = math.exp %179 : vector<16x16xf32>
    %cst_44 = arith.constant dense<0.000000e+00> : vector<16xf32>
    %181 = vector.multi_reduction <add>, %180, %cst_44 [1] : vector<16x16xf32> to vector<16xf32>
    %182 = vector.shape_cast %181 : vector<16xf32> to vector<16x1xf32>
    %183 = vector.broadcast %182 : vector<16x1xf32> to vector<16x16xf32>
    %184 = arith.divf %180, %183 : vector<16x16xf32>
    %185 = vector.extract_strided_slice %120 {offsets = [0, 3], sizes = [16, 1], strides = [1, 1]} : vector<16x4xf32> to vector<16x1xf32>
    %186 = vector.extract_strided_slice %124 {offsets = [3, 0], sizes = [1, 16], strides = [1, 1]} : vector<8x16xf32> to vector<1x16xf32>
    %187 = vector.broadcast %185 : vector<16x1xf32> to vector<16x16xf32>
    %188 = vector.broadcast %186 : vector<1x16xf32> to vector<16x16xf32>
    %189 = arith.addf %187, %188 : vector<16x16xf32>
    %cst_45 = arith.constant 0.000000e+00 : f32
    %190 = vector.broadcast %cst_45 : f32 to vector<16x16xf32>
    %191 = arith.cmpf ogt, %189, %190 : vector<16x16xf32>
    %cst_46 = arith.constant 2.000000e-01 : f32
    %192 = vector.broadcast %cst_46 : f32 to vector<16x16xf32>
    %193 = arith.mulf %192, %189 : vector<16x16xf32>
    %194 = arith.select %191, %189, %193 : vector<16x16xi1>, vector<16x16xf32>
    %195 = arith.addf %194, %0 : vector<16x16xf32>
    %cst_47 = arith.constant dense<0xFF800000> : vector<16xf32>
    %196 = vector.multi_reduction <maximumf>, %195, %cst_47 [1] : vector<16x16xf32> to vector<16xf32>
    %197 = vector.shape_cast %196 : vector<16xf32> to vector<16x1xf32>
    %198 = vector.broadcast %197 : vector<16x1xf32> to vector<16x16xf32>
    %199 = arith.subf %195, %198 : vector<16x16xf32>
    %200 = math.exp %199 : vector<16x16xf32>
    %cst_48 = arith.constant dense<0.000000e+00> : vector<16xf32>
    %201 = vector.multi_reduction <add>, %200, %cst_48 [1] : vector<16x16xf32> to vector<16xf32>
    %202 = vector.shape_cast %201 : vector<16xf32> to vector<16x1xf32>
    %203 = vector.broadcast %202 : vector<16x1xf32> to vector<16x16xf32>
    %204 = arith.divf %200, %203 : vector<16x16xf32>
    %205 = tpu.concatenate %144, %164, %184, %204 in 1 : vector<16x16xf32>, vector<16x16xf32>, vector<16x16xf32>, vector<16x16xf32> -> vector<16x64xf32>
    %206 = arith.truncf %205 : vector<16x64xf32> to vector<16x64xbf16>
    %c144_49 = arith.constant 144 : index
    %c0_50 = arith.constant 0 : index
    %207 = vector.load %arg2[%c144_49, %c0_50] : memref<352x128xf32, #tpu.memory_space<vmem>>, vector<64x128xf32>
    %208 = vector.extract_strided_slice %207 {offsets = [0, 0], sizes = [64, 32], strides = [1, 1]} : vector<64x128xf32> to vector<64x32xf32>
    %209 = tpu.concatenate %118, %118, %118, %118 in 0 : vector<16x32xf32>, vector<16x32xf32>, vector<16x32xf32>, vector<16x32xf32> -> vector<64x32xf32>
    %210 = arith.mulf %209, %208 : vector<64x32xf32>
    %211 = arith.truncf %210 : vector<64x32xf32> to vector<64x32xbf16>
    %cst_51 = arith.constant dense<0.000000e+00> : vector<16x32xf32>
    %212 = tpu.matmul %206, %211, %cst_51 {dimension_numbers = #tpu.dot_dimension_numbers<[1], [0], [0], [1], [0, 0, 1, 1], [], []>} : vector<16x64xbf16>, vector<64x32xbf16>, vector<16x32xf32> -> vector<16x32xf32>
    %213 = arith.addf %212, %119 : vector<16x32xf32>
    %c88 = arith.constant 88 : index
    %c0_52 = arith.constant 0 : index
    %214 = vector.load %arg2[%c88, %c0_52] : memref<352x128xf32, #tpu.memory_space<vmem>>, vector<1x128xf32>
    %215 = vector.extract_strided_slice %214 {offsets = [0, 0], sizes = [1, 32], strides = [1, 1]} : vector<1x128xf32> to vector<1x32xf32>
    %216 = vector.broadcast %215 : vector<1x32xf32> to vector<16x32xf32>
    %217 = arith.addf %213, %216 : vector<16x32xf32>
    %cst_53 = arith.constant 0.000000e+00 : f32
    %218 = vector.broadcast %cst_53 : f32 to vector<16x32xf32>
    %219 = arith.cmpf ogt, %217, %218 : vector<16x32xf32>
    %cst_54 = arith.constant 0.000000e+00 : f32
    %220 = vector.broadcast %cst_54 : f32 to vector<16x32xf32>
    %221 = arith.minimumf %217, %220 : vector<16x32xf32>
    %222 = math.exp %221 : vector<16x32xf32>
    %cst_55 = arith.constant 1.000000e+00 : f32
    %223 = vector.broadcast %cst_55 : f32 to vector<16x32xf32>
    %224 = arith.subf %222, %223 : vector<16x32xf32>
    %225 = arith.select %219, %217, %224 : vector<16x32xi1>, vector<16x32xf32>
    %c0_56 = arith.constant 0 : index
    %c0_57 = arith.constant 0 : index
    %226 = vector.load %arg4[%c0_56, %c0_57] : memref<16x32xf32, #tpu.memory_space<vmem>>, vector<16x32xf32>
    tpu.vector_store %arg4[%c0_56, %c0_57], %225 {strides = array<i32>} : memref<16x32xf32, #tpu.memory_space<vmem>>, vector<16x32xf32>,
    %227 = arith.truncf %225 : vector<16x32xf32> to vector<16x32xbf16>
    %c96 = arith.constant 96 : index
    %c0_58 = arith.constant 0 : index
    %228 = vector.load %arg2[%c96, %c0_58] : memref<352x128xf32, #tpu.memory_space<vmem>>, vector<32x128xf32>
    %229 = arith.truncf %228 : vector<32x128xf32> to vector<32x128xbf16>
    %cst_59 = arith.constant dense<0.000000e+00> : vector<16x128xf32>
    %230 = tpu.matmul %227, %229, %cst_59 {dimension_numbers = #tpu.dot_dimension_numbers<[1], [0], [0], [1], [0, 0, 1, 1], [], []>} : vector<16x32xbf16>, vector<32x128xbf16>, vector<16x128xf32> -> vector<16x128xf32>
    %231 = vector.extract_strided_slice %230 {offsets = [0, 0], sizes = [16, 36], strides = [1, 1]} : vector<16x128xf32> to vector<16x36xf32>
    %232 = vector.extract_strided_slice %230 {offsets = [0, 36], sizes = [16, 6], strides = [1, 1]} : vector<16x128xf32> to vector<16x6xf32>
    %233 = vector.extract_strided_slice %230 {offsets = [0, 42], sizes = [16, 6], strides = [1, 1]} : vector<16x128xf32> to vector<16x6xf32>
    %c128 = arith.constant 128 : index
    %c0_60 = arith.constant 0 : index
    %234 = vector.load %arg2[%c128, %c0_60] : memref<352x128xf32, #tpu.memory_space<vmem>>, vector<8x128xf32>
    %235 = vector.extract_strided_slice %234 {offsets = [0, 0], sizes = [8, 32], strides = [1, 1]} : vector<8x128xf32> to vector<8x32xf32>
    %236 = arith.truncf %235 : vector<8x32xf32> to vector<8x32xbf16>
    %cst_61 = arith.constant dense<0.000000e+00> : vector<8x16xf32>
    %237 = tpu.matmul %236, %227, %cst_61 {dimension_numbers = #tpu.dot_dimension_numbers<[1], [1], [0], [0], [0, 0, 1, 0], [], []>} : vector<8x32xbf16>, vector<16x32xbf16>, vector<8x16xf32> -> vector<8x16xf32>
    %238 = vector.extract_strided_slice %233 {offsets = [0, 0], sizes = [16, 1], strides = [1, 1]} : vector<16x6xf32> to vector<16x1xf32>
    %239 = vector.extract_strided_slice %237 {offsets = [0, 0], sizes = [1, 16], strides = [1, 1]} : vector<8x16xf32> to vector<1x16xf32>
    %240 = vector.broadcast %238 : vector<16x1xf32> to vector<16x16xf32>
    %241 = vector.broadcast %239 : vector<1x16xf32> to vector<16x16xf32>
    %242 = arith.addf %240, %241 : vector<16x16xf32>
    %cst_62 = arith.constant 0.000000e+00 : f32
    %243 = vector.broadcast %cst_62 : f32 to vector<16x16xf32>
    %244 = arith.cmpf ogt, %242, %243 : vector<16x16xf32>
    %cst_63 = arith.constant 2.000000e-01 : f32
    %245 = vector.broadcast %cst_63 : f32 to vector<16x16xf32>
    %246 = arith.mulf %245, %242 : vector<16x16xf32>
    %247 = arith.select %244, %242, %246 : vector<16x16xi1>, vector<16x16xf32>
    %248 = arith.addf %247, %0 : vector<16x16xf32>
    %cst_64 = arith.constant dense<0xFF800000> : vector<16xf32>
    %249 = vector.multi_reduction <maximumf>, %248, %cst_64 [1] : vector<16x16xf32> to vector<16xf32>
    %250 = vector.shape_cast %249 : vector<16xf32> to vector<16x1xf32>
    %251 = vector.broadcast %250 : vector<16x1xf32> to vector<16x16xf32>
    %252 = arith.subf %248, %251 : vector<16x16xf32>
    %253 = math.exp %252 : vector<16x16xf32>
    %cst_65 = arith.constant dense<0.000000e+00> : vector<16xf32>
    %254 = vector.multi_reduction <add>, %253, %cst_65 [1] : vector<16x16xf32> to vector<16xf32>
    %255 = vector.shape_cast %254 : vector<16xf32> to vector<16x1xf32>
    %256 = vector.broadcast %255 : vector<16x1xf32> to vector<16x16xf32>
    %257 = arith.divf %253, %256 : vector<16x16xf32>
    %258 = vector.extract_strided_slice %233 {offsets = [0, 1], sizes = [16, 1], strides = [1, 1]} : vector<16x6xf32> to vector<16x1xf32>
    %259 = vector.extract_strided_slice %237 {offsets = [1, 0], sizes = [1, 16], strides = [1, 1]} : vector<8x16xf32> to vector<1x16xf32>
    %260 = vector.broadcast %258 : vector<16x1xf32> to vector<16x16xf32>
    %261 = vector.broadcast %259 : vector<1x16xf32> to vector<16x16xf32>
    %262 = arith.addf %260, %261 : vector<16x16xf32>
    %cst_66 = arith.constant 0.000000e+00 : f32
    %263 = vector.broadcast %cst_66 : f32 to vector<16x16xf32>
    %264 = arith.cmpf ogt, %262, %263 : vector<16x16xf32>
    %cst_67 = arith.constant 2.000000e-01 : f32
    %265 = vector.broadcast %cst_67 : f32 to vector<16x16xf32>
    %266 = arith.mulf %265, %262 : vector<16x16xf32>
    %267 = arith.select %264, %262, %266 : vector<16x16xi1>, vector<16x16xf32>
    %268 = arith.addf %267, %0 : vector<16x16xf32>
    %cst_68 = arith.constant dense<0xFF800000> : vector<16xf32>
    %269 = vector.multi_reduction <maximumf>, %268, %cst_68 [1] : vector<16x16xf32> to vector<16xf32>
    %270 = vector.shape_cast %269 : vector<16xf32> to vector<16x1xf32>
    %271 = vector.broadcast %270 : vector<16x1xf32> to vector<16x16xf32>
    %272 = arith.subf %268, %271 : vector<16x16xf32>
    %273 = math.exp %272 : vector<16x16xf32>
    %cst_69 = arith.constant dense<0.000000e+00> : vector<16xf32>
    %274 = vector.multi_reduction <add>, %273, %cst_69 [1] : vector<16x16xf32> to vector<16xf32>
    %275 = vector.shape_cast %274 : vector<16xf32> to vector<16x1xf32>
    %276 = vector.broadcast %275 : vector<16x1xf32> to vector<16x16xf32>
    %277 = arith.divf %273, %276 : vector<16x16xf32>
    %278 = vector.extract_strided_slice %233 {offsets = [0, 2], sizes = [16, 1], strides = [1, 1]} : vector<16x6xf32> to vector<16x1xf32>
    %279 = vector.extract_strided_slice %237 {offsets = [2, 0], sizes = [1, 16], strides = [1, 1]} : vector<8x16xf32> to vector<1x16xf32>
    %280 = vector.broadcast %278 : vector<16x1xf32> to vector<16x16xf32>
    %281 = vector.broadcast %279 : vector<1x16xf32> to vector<16x16xf32>
    %282 = arith.addf %280, %281 : vector<16x16xf32>
    %cst_70 = arith.constant 0.000000e+00 : f32
    %283 = vector.broadcast %cst_70 : f32 to vector<16x16xf32>
    %284 = arith.cmpf ogt, %282, %283 : vector<16x16xf32>
    %cst_71 = arith.constant 2.000000e-01 : f32
    %285 = vector.broadcast %cst_71 : f32 to vector<16x16xf32>
    %286 = arith.mulf %285, %282 : vector<16x16xf32>
    %287 = arith.select %284, %282, %286 : vector<16x16xi1>, vector<16x16xf32>
    %288 = arith.addf %287, %0 : vector<16x16xf32>
    %cst_72 = arith.constant dense<0xFF800000> : vector<16xf32>
    %289 = vector.multi_reduction <maximumf>, %288, %cst_72 [1] : vector<16x16xf32> to vector<16xf32>
    %290 = vector.shape_cast %289 : vector<16xf32> to vector<16x1xf32>
    %291 = vector.broadcast %290 : vector<16x1xf32> to vector<16x16xf32>
    %292 = arith.subf %288, %291 : vector<16x16xf32>
    %293 = math.exp %292 : vector<16x16xf32>
    %cst_73 = arith.constant dense<0.000000e+00> : vector<16xf32>
    %294 = vector.multi_reduction <add>, %293, %cst_73 [1] : vector<16x16xf32> to vector<16xf32>
    %295 = vector.shape_cast %294 : vector<16xf32> to vector<16x1xf32>
    %296 = vector.broadcast %295 : vector<16x1xf32> to vector<16x16xf32>
    %297 = arith.divf %293, %296 : vector<16x16xf32>
    %298 = vector.extract_strided_slice %233 {offsets = [0, 3], sizes = [16, 1], strides = [1, 1]} : vector<16x6xf32> to vector<16x1xf32>
    %299 = vector.extract_strided_slice %237 {offsets = [3, 0], sizes = [1, 16], strides = [1, 1]} : vector<8x16xf32> to vector<1x16xf32>
    %300 = vector.broadcast %298 : vector<16x1xf32> to vector<16x16xf32>
    %301 = vector.broadcast %299 : vector<1x16xf32> to vector<16x16xf32>
    %302 = arith.addf %300, %301 : vector<16x16xf32>
    %cst_74 = arith.constant 0.000000e+00 : f32
    %303 = vector.broadcast %cst_74 : f32 to vector<16x16xf32>
    %304 = arith.cmpf ogt, %302, %303 : vector<16x16xf32>
    %cst_75 = arith.constant 2.000000e-01 : f32
    %305 = vector.broadcast %cst_75 : f32 to vector<16x16xf32>
    %306 = arith.mulf %305, %302 : vector<16x16xf32>
    %307 = arith.select %304, %302, %306 : vector<16x16xi1>, vector<16x16xf32>
    %308 = arith.addf %307, %0 : vector<16x16xf32>
    %cst_76 = arith.constant dense<0xFF800000> : vector<16xf32>
    %309 = vector.multi_reduction <maximumf>, %308, %cst_76 [1] : vector<16x16xf32> to vector<16xf32>
    %310 = vector.shape_cast %309 : vector<16xf32> to vector<16x1xf32>
    %311 = vector.broadcast %310 : vector<16x1xf32> to vector<16x16xf32>
    %312 = arith.subf %308, %311 : vector<16x16xf32>
    %313 = math.exp %312 : vector<16x16xf32>
    %cst_77 = arith.constant dense<0.000000e+00> : vector<16xf32>
    %314 = vector.multi_reduction <add>, %313, %cst_77 [1] : vector<16x16xf32> to vector<16xf32>
    %315 = vector.shape_cast %314 : vector<16xf32> to vector<16x1xf32>
    %316 = vector.broadcast %315 : vector<16x1xf32> to vector<16x16xf32>
    %317 = arith.divf %313, %316 : vector<16x16xf32>
    %318 = vector.extract_strided_slice %233 {offsets = [0, 4], sizes = [16, 1], strides = [1, 1]} : vector<16x6xf32> to vector<16x1xf32>
    %319 = vector.extract_strided_slice %237 {offsets = [4, 0], sizes = [1, 16], strides = [1, 1]} : vector<8x16xf32> to vector<1x16xf32>
    %320 = vector.broadcast %318 : vector<16x1xf32> to vector<16x16xf32>
    %321 = vector.broadcast %319 : vector<1x16xf32> to vector<16x16xf32>
    %322 = arith.addf %320, %321 : vector<16x16xf32>
    %cst_78 = arith.constant 0.000000e+00 : f32
    %323 = vector.broadcast %cst_78 : f32 to vector<16x16xf32>
    %324 = arith.cmpf ogt, %322, %323 : vector<16x16xf32>
    %cst_79 = arith.constant 2.000000e-01 : f32
    %325 = vector.broadcast %cst_79 : f32 to vector<16x16xf32>
    %326 = arith.mulf %325, %322 : vector<16x16xf32>
    %327 = arith.select %324, %322, %326 : vector<16x16xi1>, vector<16x16xf32>
    %328 = arith.addf %327, %0 : vector<16x16xf32>
    %cst_80 = arith.constant dense<0xFF800000> : vector<16xf32>
    %329 = vector.multi_reduction <maximumf>, %328, %cst_80 [1] : vector<16x16xf32> to vector<16xf32>
    %330 = vector.shape_cast %329 : vector<16xf32> to vector<16x1xf32>
    %331 = vector.broadcast %330 : vector<16x1xf32> to vector<16x16xf32>
    %332 = arith.subf %328, %331 : vector<16x16xf32>
    %333 = math.exp %332 : vector<16x16xf32>
    %cst_81 = arith.constant dense<0.000000e+00> : vector<16xf32>
    %334 = vector.multi_reduction <add>, %333, %cst_81 [1] : vector<16x16xf32> to vector<16xf32>
    %335 = vector.shape_cast %334 : vector<16xf32> to vector<16x1xf32>
    %336 = vector.broadcast %335 : vector<16x1xf32> to vector<16x16xf32>
    %337 = arith.divf %333, %336 : vector<16x16xf32>
    %338 = vector.extract_strided_slice %233 {offsets = [0, 5], sizes = [16, 1], strides = [1, 1]} : vector<16x6xf32> to vector<16x1xf32>
    %339 = vector.extract_strided_slice %237 {offsets = [5, 0], sizes = [1, 16], strides = [1, 1]} : vector<8x16xf32> to vector<1x16xf32>
    %340 = vector.broadcast %338 : vector<16x1xf32> to vector<16x16xf32>
    %341 = vector.broadcast %339 : vector<1x16xf32> to vector<16x16xf32>
    %342 = arith.addf %340, %341 : vector<16x16xf32>
    %cst_82 = arith.constant 0.000000e+00 : f32
    %343 = vector.broadcast %cst_82 : f32 to vector<16x16xf32>
    %344 = arith.cmpf ogt, %342, %343 : vector<16x16xf32>
    %cst_83 = arith.constant 2.000000e-01 : f32
    %345 = vector.broadcast %cst_83 : f32 to vector<16x16xf32>
    %346 = arith.mulf %345, %342 : vector<16x16xf32>
    %347 = arith.select %344, %342, %346 : vector<16x16xi1>, vector<16x16xf32>
    %348 = arith.addf %347, %0 : vector<16x16xf32>
    %cst_84 = arith.constant dense<0xFF800000> : vector<16xf32>
    %349 = vector.multi_reduction <maximumf>, %348, %cst_84 [1] : vector<16x16xf32> to vector<16xf32>
    %350 = vector.shape_cast %349 : vector<16xf32> to vector<16x1xf32>
    %351 = vector.broadcast %350 : vector<16x1xf32> to vector<16x16xf32>
    %352 = arith.subf %348, %351 : vector<16x16xf32>
    %353 = math.exp %352 : vector<16x16xf32>
    %cst_85 = arith.constant dense<0.000000e+00> : vector<16xf32>
    %354 = vector.multi_reduction <add>, %353, %cst_85 [1] : vector<16x16xf32> to vector<16xf32>
    %355 = vector.shape_cast %354 : vector<16xf32> to vector<16x1xf32>
    %356 = vector.broadcast %355 : vector<16x1xf32> to vector<16x16xf32>
    %357 = arith.divf %353, %356 : vector<16x16xf32>
    %358 = tpu.concatenate %257, %277, %297, %317, %337, %357 in 1 : vector<16x16xf32>, vector<16x16xf32>, vector<16x16xf32>, vector<16x16xf32>, vector<16x16xf32>, vector<16x16xf32> -> vector<16x96xf32>
    %359 = arith.truncf %358 : vector<16x96xf32> to vector<16x96xbf16>
    %c208 = arith.constant 208 : index
    %c0_86 = arith.constant 0 : index
    %360 = vector.load %arg2[%c208, %c0_86] : memref<352x128xf32, #tpu.memory_space<vmem>>, vector<96x128xf32>
    %361 = vector.extract_strided_slice %360 {offsets = [0, 0], sizes = [96, 36], strides = [1, 1]} : vector<96x128xf32> to vector<96x36xf32>
    %362 = tpu.concatenate %231, %231, %231, %231, %231, %231 in 0 : vector<16x36xf32>, vector<16x36xf32>, vector<16x36xf32>, vector<16x36xf32>, vector<16x36xf32>, vector<16x36xf32> -> vector<96x36xf32>
    %363 = arith.mulf %362, %361 : vector<96x36xf32>
    %364 = arith.truncf %363 : vector<96x36xf32> to vector<96x36xbf16>
    %cst_87 = arith.constant dense<0.000000e+00> : vector<16x36xf32>
    %365 = tpu.matmul %359, %364, %cst_87 {dimension_numbers = #tpu.dot_dimension_numbers<[1], [0], [0], [1], [0, 0, 1, 1], [], []>} : vector<16x96xbf16>, vector<96x36xbf16>, vector<16x36xf32> -> vector<16x36xf32>
    %366 = tpu.concatenate %365, %232, %233 in 1 : vector<16x36xf32>, vector<16x6xf32>, vector<16x6xf32> -> vector<16x48xf32>
    %c304 = arith.constant 304 : index
    %c0_88 = arith.constant 0 : index
    %367 = vector.load %arg2[%c304, %c0_88] : memref<352x128xf32, #tpu.memory_space<vmem>>, vector<48x128xf32>
    %368 = arith.truncf %367 : vector<48x128xf32> to vector<48x128xbf16>
    %369 = arith.truncf %366 : vector<16x48xf32> to vector<16x48xbf16>
    %cst_89 = arith.constant dense<0.000000e+00> : vector<16x128xf32>
    %370 = tpu.matmul %369, %368, %cst_89 {dimension_numbers = #tpu.dot_dimension_numbers<[1], [0], [0], [1], [0, 0, 1, 1], [], []>} : vector<16x48xbf16>, vector<48x128xbf16>, vector<16x128xf32> -> vector<16x128xf32>
    %c136 = arith.constant 136 : index
    %c0_90 = arith.constant 0 : index
    %371 = vector.load %arg2[%c136, %c0_90] : memref<352x128xf32, #tpu.memory_space<vmem>>, vector<1x128xf32>
    %372 = vector.broadcast %371 : vector<1x128xf32> to vector<16x128xf32>
    %373 = arith.addf %370, %372 : vector<16x128xf32>
    %c0_91 = arith.constant 0 : index
    %c0_92 = arith.constant 0 : index
    %374 = vector.load %arg3[%c0_91, %c0_92] : memref<16x128xf32, #tpu.memory_space<vmem>>, vector<16x128xf32>
    tpu.vector_store %arg3[%c0_91, %c0_92], %373 {strides = array<i32>} : memref<16x128xf32, #tpu.memory_space<vmem>>, vector<16x128xf32>,
    return
  }
}

</mosaic_0001>

<llo_original>
// kernel: tpu_custom_call.1
$region0: #{tpu_custom_call.1}
  #allocation0 [shape = 'u32[]', space=smem, size = 0x4, offset = 0x4, fixed_abs, tag = 'smem constant byte address 0x4 - core index']
  #allocation1 [shape = 'u32[144,128]{1,0:T(1,128)}', space=vmem, size = 0x12000, scoped, tag = 'internal scratch']
  %s0 = inlined_call_operand.hbm [shape: f32[16,32], index: 0, kind: input, shape index: {}]
  %s1 = inlined_call_operand.hbm [shape: f32[16,16], index: 1, kind: input, shape index: {}]
  %s2 = inlined_call_operand.hbm [shape: f32[352,128], index: 2, kind: input, shape index: {}]
  %s3 = inlined_call_operand.hbm [shape: f32[16,128], index: 3, kind: output, shape index: {0}]
  %s4 = inlined_call_operand.hbm [shape: f32[16,32], index: 4, kind: output, shape index: {1}]
  %5 = xla_tuple %s3, %s4
  %s6 = sld [smem:[#allocation0]]
  $region42: #{tpu_custom_call.1} parent=0
    _
  %s8 = ssub.s32 1, %s6
  %s9 = scalar_select 0, %s8, %s6
  $region1: #{tpu_custom_call.1} parent=0
    #allocation2 [shape = 'u8[8192]{0}', space=vmem, size = 0x2000, scoped, tag = 'input window, operand 0, single buffered']
    #allocation3 [shape = 's32[1]{0}', space=sflag, size = 0x4, scoped, tag = 'scoped memory for tpu_custom_call.1']
    #allocation4 [shape = 's32[1]{0}', space=sflag, size = 0x4, scoped, tag = 'scoped memory for tpu_custom_call.1']
    #allocation5 [shape = 'u8[8192]{0}', space=vmem, size = 0x2000, scoped, tag = 'input window, operand 1, single buffered']
    #allocation6 [shape = 's32[1]{0}', space=sflag, size = 0x4, scoped, tag = 'scoped memory for tpu_custom_call.1']
    #allocation7 [shape = 'u8[180224]{0}', space=vmem, size = 0x2c000, scoped, tag = 'input window, operand 2, single buffered']
    #allocation8 [shape = 'u8[8192]{0}', space=vmem, size = 0x2000, scoped, tag = 'output window, operand 0, single buffered']
    #allocation9 [shape = 'u8[8192]{0}', space=vmem, size = 0x2000, scoped, tag = 'output window, operand 1, single buffered']
    #allocation10 [shape = 's32[1]{0}', space=sflag, size = 0x4, scoped, tag = 'scoped memory for tpu_custom_call.1']
    %10 = vsyncpa [#allocation3], 0
    %11 = vsyncpa [#allocation6], 0
    %12 = vsyncpa [#allocation4], 0
    %13 = vsyncpa [#allocation10], 0
    // Predicated region
    $region2: #{tpu_custom_call.1} parent=1 // pred_check
      _
    $region3: #{tpu_custom_call.1} parent=1 // pred_check_branch
      %15 = sbr.rel (0) target = $region5
    $region4: #{tpu_custom_call.1} parent=1 // pred_region
      %s17 = ssub.s32 256, 256
      %18 = vsyncadd [#allocation3], %s17
      %s19 = sshll.u32 [#allocation2], 4
      %s20 = int_to_ptr.vmem [resolvable:$true] %s19
      %25 = dma.hbm_to_vmem [thread:$0]  %s0, 256, %s20, [#allocation3], 128, 128, 8
    $region5: #{tpu_custom_call.1} parent=1 // pred_fallthru
      _
    // Predicated region
    $region6: #{tpu_custom_call.1} parent=1 // pred_check
      _
    $region7: #{tpu_custom_call.1} parent=1 // pred_check_branch
      %27 = sbr.rel (0) target = $region9
    $region8: #{tpu_custom_call.1} parent=1 // pred_region
      %s29 = ssub.s32 256, 256
      %30 = vsyncadd [#allocation6], %s29
      %s31 = sshll.u32 [#allocation5], 4
      %s32 = int_to_ptr.vmem [resolvable:$true] %s31
      %37 = dma.hbm_to_vmem [thread:$0]  %s1, 256, %s32, [#allocation6], 128, 128, 8
    $region9: #{tpu_custom_call.1} parent=1 // pred_fallthru
      _
    // Predicated region
    $region10: #{tpu_custom_call.1} parent=1 // pred_check
      _
    $region11: #{tpu_custom_call.1} parent=1 // pred_check_branch
      %39 = sbr.rel (0) target = $region13
    $region12: #{tpu_custom_call.1} parent=1 // pred_region
      %s41 = ssub.s32 5632, 5632
      %42 = vsyncadd [#allocation6], %s41
      %s43 = sshll.u32 [#allocation7], 4
      %s44 = int_to_ptr.vmem [resolvable:$true] %s43
      %49 = dma.hbm_to_vmem [thread:$0]  %s2, 5632, %s44, [#allocation6], 128, 128, 8
    $region13: #{tpu_custom_call.1} parent=1 // pred_fallthru
      _
    // Predicated region
    $region14: #{tpu_custom_call.1} parent=1 // pred_check
      _
    $region15: #{tpu_custom_call.1} parent=1 // pred_check_branch
      %51 = sbr.rel (0) target = $region17
    $region16: #{tpu_custom_call.1} parent=1 // pred_region
      %52 = dma.done [#allocation3], 256
    $region17: #{tpu_custom_call.1} parent=1 // pred_fallthru
      _
    // Predicated region
    $region18: #{tpu_custom_call.1} parent=1 // pred_check
      _
    $region19: #{tpu_custom_call.1} parent=1 // pred_check_branch
      %54 = sbr.rel (0) target = $region21
    $region20: #{tpu_custom_call.1} parent=1 // pred_region
      %55 = dma.done [#allocation6], 256
    $region21: #{tpu_custom_call.1} parent=1 // pred_fallthru
      _
    // Predicated region
    $region22: #{tpu_custom_call.1} parent=1 // pred_check
      _
    $region23: #{tpu_custom_call.1} parent=1 // pred_check_branch
      %57 = sbr.rel (0) target = $region25
    $region24: #{tpu_custom_call.1} parent=1 // pred_region
      %58 = dma.done [#allocation6], 5632
    $region25: #{tpu_custom_call.1} parent=1 // pred_fallthru
      _
    %v60 = vld [vmem:[#allocation5] sm:$0xff]
    %v61 = vld [vmem:[#allocation5 + $0x8] sm:$0xff]
    %v62 = vld [vmem:[#allocation2] sm:$0xff]
    %v63 = vld [vmem:[#allocation2 + $0x8] sm:$0xff]
    %v64 = vpack.c.bf16 %v63, %v62
    %v65 = vld [vmem:[#allocation7] sm:$0xff]
    %v66 = vld [vmem:[#allocation7 + $0x8] sm:$0xff]
    %v67 = vld [vmem:[#allocation7 + $0x10] sm:$0xff]
    %v68 = vld [vmem:[#allocation7 + $0x18] sm:$0xff]
    %v69 = vpack.c.bf16 %v66, %v65
    %v70 = vpack.c.bf16 %v68, %v67
    %vm71 = vcmask 261120
    %v73 = vsel %vm71, %v64, 0
    %75 = vmatprep.subr.bf16.mxu0 0
    %76 = vmatpush1.bf16.msra.mxu0 0
    %77 = vmatprep.subr.bf16.mxu0 0
    %78 = vmatpush1.bf16.msra.mxu0 0
    %79 = vmatprep.subr.bf16.mxu0 0
    %80 = vmatpush1.bf16.msra.mxu0 0
    %81 = vmatprep.subr.bf16.mxu0 0
    %82 = vmatpush1.bf16.msra.mxu0 0
    %83 = vmatprep.subr.bf16.mxu0 0
    %84 = vmatpush1.bf16.msra.mxu0 0
    %85 = vmatprep.subr.bf16.mxu0 0
    %86 = vmatpush1.bf16.msra.mxu0 0
    %87 = vmatprep.subr.bf16.mxu0 0
    %88 = vmatpush1.bf16.msra.mxu0 %v70
    %89 = vmatprep.subr.bf16.mxu0 0
    %90 = vmatpush1.bf16.msra.mxu0 %v69
    %91 = vmatprep.subr.bf16.mxu0 0
    %92 = vmatpush2.bf16.msra.mxu0 0
    %93 = vmatprep.subr.bf16.mxu0 0
    %94 = vmatpush2.bf16.msra.mxu0 0
    %95 = vmatprep.subr.bf16.mxu0 0
    %96 = vmatpush2.bf16.msra.mxu0 0
    %97 = vmatprep.subr.bf16.mxu0 0
    %98 = vmatpush2.bf16.msra.mxu0 0
    %99 = vmatprep.subr.bf16.mxu0 0
    %100 = vmatpush2.bf16.msra.mxu0 0
    %101 = vmatprep.subr.bf16.mxu0 0
    %102 = vmatpush2.bf16.msra.mxu0 0
    %103 = vmatprep.subr.bf16.mxu0 0
    %104 = vmatpush2.bf16.msra.mxu0 0
    %105 = vmatprep.subr.bf16.mxu0 0
    %106 = vmatpush2.bf16.msra.mxu0 0
    %107 = vmatprep.mubr.bf16.mxu0 0
    %108 = vmatmul.mubr.bf16.gmra.mxu0 %v73
    %v109 = vpop.f32.mrf.mxu0
    %v110 = vadd.f32 0.0, %v109
    %v111 = vpop.f32.mrf.mxu0
    %v112 = vpop.f32.mrf.mxu0
    %v113 = vadd.f32 0.0, %v112
    %v114 = vpop.f32.mrf.mxu0
    %115 = vdwg.mxu0
    %v116 = vld [vmem:[#allocation7 + $0x20] sm:$0xff]
    %v117 = vpack.c.bf16 %v116, %v116
    %v119 = vsel %vm71, %v117, 0
    %121 = vmatprep.subr.bf16.mxu0 0
    %122 = vmatpush1.bf16.xpose.msra.mxu0 0
    %123 = vmatprep.subr.bf16.mxu0 0
    %124 = vmatpush1.bf16.xpose.msra.mxu0 0
    %125 = vmatprep.subr.bf16.mxu0 0
    %126 = vmatpush1.bf16.xpose.msra.mxu0 0
    %127 = vmatprep.subr.bf16.mxu0 0
    %128 = vmatpush1.bf16.xpose.msra.mxu0 0
    %129 = vmatprep.subr.bf16.mxu0 0
    %130 = vmatpush1.bf16.xpose.msra.mxu0 0
    %131 = vmatprep.subr.bf16.mxu0 0
    %132 = vmatpush1.bf16.xpose.msra.mxu0 0
    %133 = vmatprep.subr.bf16.mxu0 0
    %134 = vmatpush1.bf16.xpose.msra.mxu0 0
    %135 = vmatprep.subr.bf16.mxu0 0
    %136 = vmatpush1.bf16.xpose.msra.mxu0 %v73
    %137 = vmatprep.subr.bf16.mxu0 0
    %138 = vmatpush2.bf16.xpose.msra.mxu0 0
    %139 = vmatprep.subr.bf16.mxu0 0
    %140 = vmatpush2.bf16.xpose.msra.mxu0 0
    %141 = vmatprep.subr.bf16.mxu0 0
    %142 = vmatpush2.bf16.xpose.msra.mxu0 0
    %143 = vmatprep.subr.bf16.mxu0 0
    %144 = vmatpush2.bf16.xpose.msra.mxu0 0
    %145 = vmatprep.subr.bf16.mxu0 0
    %146 = vmatpush2.bf16.xpose.msra.mxu0 0
    %147 = vmatprep.subr.bf16.mxu0 0
    %148 = vmatpush2.bf16.xpose.msra.mxu0 0
    %149 = vmatprep.subr.bf16.mxu0 0
    %150 = vmatpush2.bf16.xpose.msra.mxu0 0
    %151 = vmatprep.subr.bf16.mxu0 0
    %152 = vmatpush2.bf16.xpose.msra.mxu0 0
    %153 = vmatprep.mubr.bf16.mxu0 0
    %154 = vmatmul.mubr.bf16.gmra.mxu0 %v119
    %v155 = vpop.f32.mrf.mxu0
    %v156 = vadd.f32 0.0, %v155
    %v157 = vpop.f32.mrf.mxu0
    %v158 = vpop.f32.mrf.mxu0
    %v159 = vpop.f32.mrf.mxu0
    %160 = vdwg.mxu0
    %162 = vset.pattern.permute.xlu0 64
    %163 = vperm.xlu0 %162, %v110
    %v164 = vpop.permute.xlu0 %163
    %167 = vset.pattern.permute.xlu0 64
    %168 = vperm.xlu0 %167, %v113
    %v169 = vpop.permute.xlu0 %168
    %v171 = vlaneseq
    %v172 = vshrl.u32 %v171, 7
    %v173 = vsub.s32 0, %v172
    %v174 = vrot.slane %v156, %v173
    %v175 = vadd.f32 %v164, %v174
    %v176 = vadd.f32 %v169, %v174
    %vm177 = vcmp.gt.f32.partialorder %v175, 0.0
    %vm178 = vcmp.gt.f32.partialorder %v176, 0.0
    %v179 = vmul.f32 %v175, 0.2
    %v180 = vmul.f32 %v176, 0.2
    %v181 = vsel %vm177, %v175, %v179
    %v182 = vsel %vm178, %v176, %v180
    %v183 = vadd.f32 %v181, %v60
    %v184 = vadd.f32 %v182, %v61
    %vm185 = vcmask 130048
    %v186 = vsel %vm185, %v183, -inf
    %187 = vmax.xlane.f32.xlu0 %v186
    %v188 = vpop.xlane.xlu0 %187
    %v189 = vsel %vm185, %v184, -inf
    %190 = vmax.xlane.f32.xlu0 %v189
    %v191 = vpop.xlane.xlu0 %190
    %v192 = vsub.f32 %v183, %v188
    %v193 = vsub.f32 %v184, %v191
    %v194 = vmul.f32 %v192, 1.442695
    %v195 = vpow.pop %v194
    %v196 = vmul.f32 %v193, 1.442695
    %v197 = vpow.pop %v196
    %v198 = vsel %vm185, %v195, 0.0
    %199 = vadd.xlane.f32.xlu0 %v198
    %v200 = vpop.xlane.xlu0 %199
    %v201 = vsel %vm185, %v197, 0.0
    %202 = vadd.xlane.f32.xlu0 %v201
    %v203 = vpop.xlane.xlu0 %202
    %v204 = vrcp.pop %v200
    %v205 = vmul.f32 %v195, %v204
    %v206 = vrcp.pop %v203
    %v207 = vmul.f32 %v197, %v206
    %208 = vset.pattern.permute.xlu0 65
    %209 = vperm.xlu0 %208, %v110
    %v210 = vpop.permute.xlu0 %209
    %212 = vset.pattern.permute.xlu0 65
    %213 = vperm.xlu0 %212, %v113
    %v214 = vpop.permute.xlu0 %213
    %v216 = vlaneseq
    %v217 = vshrl.u32 %v216, 7
    %v218 = vsub.s32 1, %v217
    %v219 = vrot.slane %v156, %v218
    %v220 = vadd.f32 %v210, %v219
    %v221 = vadd.f32 %v214, %v219
    %vm222 = vcmp.gt.f32.partialorder %v220, 0.0
    %vm223 = vcmp.gt.f32.partialorder %v221, 0.0
    %v224 = vmul.f32 %v220, 0.2
    %v225 = vmul.f32 %v221, 0.2
    %v226 = vsel %vm222, %v220, %v224
    %v227 = vsel %vm223, %v221, %v225
    %v228 = vadd.f32 %v226, %v60
    %v229 = vadd.f32 %v227, %v61
    %v230 = vsel %vm185, %v228, -inf
    %231 = vmax.xlane.f32.xlu0 %v230
    %v232 = vpop.xlane.xlu0 %231
    %v233 = vsel %vm185, %v229, -inf
    %234 = vmax.xlane.f32.xlu0 %v233
    %v235 = vpop.xlane.xlu0 %234
    %v236 = vsub.f32 %v228, %v232
    %v237 = vsub.f32 %v229, %v235
    %v238 = vmul.f32 %v236, 1.442695
    %v239 = vpow.pop %v238
    %v240 = vmul.f32 %v237, 1.442695
    %v241 = vpow.pop %v240
    %v242 = vsel %vm185, %v239, 0.0
    %243 = vadd.xlane.f32.xlu0 %v242
    %v244 = vpop.xlane.xlu0 %243
    %v245 = vsel %vm185, %v241, 0.0
    %246 = vadd.xlane.f32.xlu0 %v245
    %v247 = vpop.xlane.xlu0 %246
    %v248 = vrcp.pop %v244
    %v249 = vmul.f32 %v239, %v248
    %v250 = vrcp.pop %v247
    %v251 = vmul.f32 %v241, %v250
    %252 = vset.pattern.permute.xlu0 66
    %253 = vperm.xlu0 %252, %v110
    %v254 = vpop.permute.xlu0 %253
    %256 = vset.pattern.permute.xlu0 66
    %257 = vperm.xlu0 %256, %v113
    %v258 = vpop.permute.xlu0 %257
    %v260 = vlaneseq
    %v261 = vshrl.u32 %v260, 7
    %v262 = vsub.s32 2, %v261
    %v263 = vrot.slane %v156, %v262
    %v264 = vadd.f32 %v254, %v263
    %v265 = vadd.f32 %v258, %v263
    %vm266 = vcmp.gt.f32.partialorder %v264, 0.0
    %vm267 = vcmp.gt.f32.partialorder %v265, 0.0
    %v268 = vmul.f32 %v264, 0.2
    %v269 = vmul.f32 %v265, 0.2
    %v270 = vsel %vm266, %v264, %v268
    %v271 = vsel %vm267, %v265, %v269
    %v272 = vadd.f32 %v270, %v60
    %v273 = vadd.f32 %v271, %v61
    %v274 = vsel %vm185, %v272, -inf
    %275 = vmax.xlane.f32.xlu0 %v274
    %v276 = vpop.xlane.xlu0 %275
    %v277 = vsel %vm185, %v273, -inf
    %278 = vmax.xlane.f32.xlu0 %v277
    %v279 = vpop.xlane.xlu0 %278
    %v280 = vsub.f32 %v272, %v276
    %v281 = vsub.f32 %v273, %v279
    %v282 = vmul.f32 %v280, 1.442695
    %v283 = vpow.pop %v282
    %v284 = vmul.f32 %v281, 1.442695
    %v285 = vpow.pop %v284
    %v286 = vsel %vm185, %v283, 0.0
    %287 = vadd.xlane.f32.xlu0 %v286
    %v288 = vpop.xlane.xlu0 %287
    %v289 = vsel %vm185, %v285, 0.0
    %290 = vadd.xlane.f32.xlu0 %v289
    %v291 = vpop.xlane.xlu0 %290
    %v292 = vrcp.pop %v288
    %v293 = vmul.f32 %v283, %v292
    %v294 = vrcp.pop %v291
    %v295 = vmul.f32 %v285, %v294
    %296 = vset.pattern.permute.xlu0 67
    %297 = vperm.xlu0 %296, %v110
    %v298 = vpop.permute.xlu0 %297
    %300 = vset.pattern.permute.xlu0 67
    %301 = vperm.xlu0 %300, %v113
    %v302 = vpop.permute.xlu0 %301
    %v304 = vlaneseq
    %v305 = vshrl.u32 %v304, 7
    %v306 = vsub.s32 3, %v305
    %v307 = vrot.slane %v156, %v306
    %v308 = vadd.f32 %v298, %v307
    %v309 = vadd.f32 %v302, %v307
    %vm310 = vcmp.gt.f32.partialorder %v308, 0.0
    %vm311 = vcmp.gt.f32.partialorder %v309, 0.0
    %v312 = vmul.f32 %v308, 0.2
    %v313 = vmul.f32 %v309, 0.2
    %v314 = vsel %vm310, %v308, %v312
    %v315 = vsel %vm311, %v309, %v313
    %v316 = vadd.f32 %v314, %v60
    %v317 = vadd.f32 %v315, %v61
    %v318 = vsel %vm185, %v316, -inf
    %319 = vmax.xlane.f32.xlu0 %v318
    %v320 = vpop.xlane.xlu0 %319
    %v321 = vsel %vm185, %v317, -inf
    %322 = vmax.xlane.f32.xlu0 %v321
    %v323 = vpop.xlane.xlu0 %322
    %v324 = vsub.f32 %v316, %v320
    %v325 = vsub.f32 %v317, %v323
    %v326 = vmul.f32 %v324, 1.442695
    %v327 = vpow.pop %v326
    %v328 = vmul.f32 %v325, 1.442695
    %v329 = vpow.pop %v328
    %v330 = vsel %vm185, %v327, 0.0
    %331 = vadd.xlane.f32.xlu0 %v330
    %v332 = vpop.xlane.xlu0 %331
    %v333 = vsel %vm185, %v329, 0.0
    %334 = vadd.xlane.f32.xlu0 %v333
    %v335 = vpop.xlane.xlu0 %334
    %v336 = vrcp.pop %v332
    %v337 = vmul.f32 %v327, %v336
    %v338 = vrcp.pop %v335
    %v339 = vmul.f32 %v329, %v338
    %342 = vrot.lane.b32.xlu0 %v249, 16
    %v343 = vpop.permute.xlu0 %342
    %344 = vrot.lane.b32.xlu0 %v251, 16
    %v345 = vpop.permute.xlu0 %344
    %350 = vrot.lane.b32.xlu0 %v293, 32
    %v351 = vpop.permute.xlu0 %350
    %352 = vrot.lane.b32.xlu0 %v295, 32
    %v353 = vpop.permute.xlu0 %352
    %358 = vrot.lane.b32.xlu0 %v337, 48
    %v359 = vpop.permute.xlu0 %358
    %360 = vrot.lane.b32.xlu0 %v339, 48
    %v361 = vpop.permute.xlu0 %360
    %v364 = vsel %vm185, %v205, %v343
    %v365 = vsel %vm185, %v207, %v345
    %v366 = vsel %vm71, %v364, %v351
    %v367 = vsel %vm71, %v365, %v353
    %vm368 = vcmask 392192
    %v369 = vsel %vm368, %v366, %v359
    %v370 = vsel %vm368, %v367, %v361
    %v371 = vpack.c.bf16 %v370, %v369
    %v372 = vld [vmem:[#allocation7 + $0x90] sm:$0xff]
    %v373 = vld [vmem:[#allocation7 + $0x98] sm:$0xff]
    %v374 = vld [vmem:[#allocation7 + $0xa0] sm:$0xff]
    %v375 = vld [vmem:[#allocation7 + $0xa8] sm:$0xff]
    %v376 = vld [vmem:[#allocation7 + $0xb0] sm:$0xff]
    %v377 = vld [vmem:[#allocation7 + $0xb8] sm:$0xff]
    %v378 = vld [vmem:[#allocation7 + $0xc0] sm:$0xff]
    %v379 = vld [vmem:[#allocation7 + $0xc8] sm:$0xff]
    %v380 = vmul.f32 %v110, %v372
    %v381 = vmul.f32 %v113, %v373
    %v382 = vmul.f32 %v110, %v374
    %v383 = vmul.f32 %v113, %v375
    %v384 = vmul.f32 %v110, %v376
    %v385 = vmul.f32 %v113, %v377
    %v386 = vmul.f32 %v110, %v378
    %v387 = vmul.f32 %v113, %v379
    %v388 = vpack.c.bf16 %v381, %v380
    %v389 = vpack.c.bf16 %v383, %v382
    %v390 = vpack.c.bf16 %v385, %v384
    %v391 = vpack.c.bf16 %v387, %v386
    %392 = vrot.lane.b32.xlu0 %v110, 96
    %v393 = vpop.permute.xlu0 %392
    %394 = vrot.lane.b32.xlu0 %v113, 96
    %v395 = vpop.permute.xlu0 %394
    %vm398 = vcmask 523264
    %v400 = vsel %vm398, %v371, 0
    %402 = vmatprep.subr.bf16.mxu0 0
    %403 = vmatpush1.bf16.msra.mxu0 0
    %404 = vmatprep.subr.bf16.mxu0 0
    %405 = vmatpush1.bf16.msra.mxu0 0
    %406 = vmatprep.subr.bf16.mxu0 0
    %407 = vmatpush1.bf16.msra.mxu0 0
    %408 = vmatprep.subr.bf16.mxu0 0
    %409 = vmatpush1.bf16.msra.mxu0 0
    %410 = vmatprep.subr.bf16.mxu0 0
    %411 = vmatpush1.bf16.msra.mxu0 %v391
    %412 = vmatprep.subr.bf16.mxu0 0
    %413 = vmatpush1.bf16.msra.mxu0 %v390
    %414 = vmatprep.subr.bf16.mxu0 0
    %415 = vmatpush1.bf16.msra.mxu0 %v389
    %416 = vmatprep.subr.bf16.mxu0 0
    %417 = vmatpush1.bf16.msra.mxu0 %v388
    %418 = vmatprep.subr.bf16.mxu0 0
    %419 = vmatpush2.bf16.msra.mxu0 0
    %420 = vmatprep.subr.bf16.mxu0 0
    %421 = vmatpush2.bf16.msra.mxu0 0
    %422 = vmatprep.subr.bf16.mxu0 0
    %423 = vmatpush2.bf16.msra.mxu0 0
    %424 = vmatprep.subr.bf16.mxu0 0
    %425 = vmatpush2.bf16.msra.mxu0 0
    %426 = vmatprep.subr.bf16.mxu0 0
    %427 = vmatpush2.bf16.msra.mxu0 0
    %428 = vmatprep.subr.bf16.mxu0 0
    %429 = vmatpush2.bf16.msra.mxu0 0
    %430 = vmatprep.subr.bf16.mxu0 0
    %431 = vmatpush2.bf16.msra.mxu0 0
    %432 = vmatprep.subr.bf16.mxu0 0
    %433 = vmatpush2.bf16.msra.mxu0 0
    %434 = vmatprep.mubr.bf16.mxu0 0
    %435 = vmatmul.mubr.bf16.gmra.mxu0 %v400
    %v436 = vpop.f32.mrf.mxu0
    %v437 = vadd.f32 %v393, %v436
    %v438 = vpop.f32.mrf.mxu0
    %v439 = vpop.f32.mrf.mxu0
    %v440 = vadd.f32 %v395, %v439
    %v441 = vpop.f32.mrf.mxu0
    %442 = vdwg.mxu0
    %v443 = vld [vmem:[#allocation7 + $0x28] sm:$0x1]
    %v444 = vlaneseq
    %v445 = vshrl.u32 %v444, 7
    %v446 = vsub.s32 0, %v445
    %v447 = vrot.slane %v443, %v446
    %v448 = vadd.f32 %v437, %v447
    %v449 = vadd.f32 %v440, %v447
    %vm450 = vcmp.gt.f32.partialorder %v448, 0.0
    %vm451 = vcmp.gt.f32.partialorder %v449, 0.0
    %v452 = vmin.f32 %v448, 0.0
    %v453 = vmin.f32 %v449, 0.0
    %v454 = vmul.f32 %v452, 1.442695
    %v455 = vpow.pop %v454
    %v456 = vmul.f32 %v453, 1.442695
    %v457 = vpow.pop %v456
    %v458 = vsub.f32 %v455, 1.0
    %v459 = vsub.f32 %v457, 1.0
    %v460 = vsel %vm450, %v448, %v458
    %v461 = vsel %vm451, %v449, %v459
    %v462 = vpack.c.bf16 %v461, %v460
    %v463 = vld [vmem:[#allocation7 + $0x30] sm:$0xff]
    %v464 = vld [vmem:[#allocation7 + $0x38] sm:$0xff]
    %v465 = vld [vmem:[#allocation7 + $0x40] sm:$0xff]
    %v466 = vld [vmem:[#allocation7 + $0x48] sm:$0xff]
    %v467 = vpack.c.bf16 %v464, %v463
    %v468 = vpack.c.bf16 %v466, %v465
    %v470 = vsel %vm71, %v462, 0
    %472 = vmatprep.subr.bf16.mxu0 0
    %473 = vmatpush1.bf16.msra.mxu0 0
    %474 = vmatprep.subr.bf16.mxu0 0
    %475 = vmatpush1.bf16.msra.mxu0 0
    %476 = vmatprep.subr.bf16.mxu0 0
    %477 = vmatpush1.bf16.msra.mxu0 0
    %478 = vmatprep.subr.bf16.mxu0 0
    %479 = vmatpush1.bf16.msra.mxu0 0
    %480 = vmatprep.subr.bf16.mxu0 0
    %481 = vmatpush1.bf16.msra.mxu0 0
    %482 = vmatprep.subr.bf16.mxu0 0
    %483 = vmatpush1.bf16.msra.mxu0 0
    %484 = vmatprep.subr.bf16.mxu0 0
    %485 = vmatpush1.bf16.msra.mxu0 %v468
    %486 = vmatprep.subr.bf16.mxu0 0
    %487 = vmatpush1.bf16.msra.mxu0 %v467
    %488 = vmatprep.subr.bf16.mxu0 0
    %489 = vmatpush2.bf16.msra.mxu0 0
    %490 = vmatprep.subr.bf16.mxu0 0
    %491 = vmatpush2.bf16.msra.mxu0 0
    %492 = vmatprep.subr.bf16.mxu0 0
    %493 = vmatpush2.bf16.msra.mxu0 0
    %494 = vmatprep.subr.bf16.mxu0 0
    %495 = vmatpush2.bf16.msra.mxu0 0
    %496 = vmatprep.subr.bf16.mxu0 0
    %497 = vmatpush2.bf16.msra.mxu0 0
    %498 = vmatprep.subr.bf16.mxu0 0
    %499 = vmatpush2.bf16.msra.mxu0 0
    %500 = vmatprep.subr.bf16.mxu0 0
    %501 = vmatpush2.bf16.msra.mxu0 0
    %502 = vmatprep.subr.bf16.mxu0 0
    %503 = vmatpush2.bf16.msra.mxu0 0
    %504 = vmatprep.mubr.bf16.mxu0 0
    %505 = vmatmul.mubr.bf16.gmra.mxu0 %v470
    %v506 = vpop.f32.mrf.mxu0
    %v507 = vadd.f32 0.0, %v506
    %v508 = vpop.f32.mrf.mxu0
    %v509 = vpop.f32.mrf.mxu0
    %v510 = vadd.f32 0.0, %v509
    %v511 = vpop.f32.mrf.mxu0
    %512 = vdwg.mxu0
    %v513 = vld [vmem:[#allocation7 + $0x50] sm:$0xff]
    %v514 = vpack.c.bf16 %v513, %v513
    %v516 = vsel %vm71, %v514, 0
    %518 = vmatprep.subr.bf16.mxu0 0
    %519 = vmatpush1.bf16.xpose.msra.mxu0 0
    %520 = vmatprep.subr.bf16.mxu0 0
    %521 = vmatpush1.bf16.xpose.msra.mxu0 0
    %522 = vmatprep.subr.bf16.mxu0 0
    %523 = vmatpush1.bf16.xpose.msra.mxu0 0
    %524 = vmatprep.subr.bf16.mxu0 0
    %525 = vmatpush1.bf16.xpose.msra.mxu0 0
    %526 = vmatprep.subr.bf16.mxu0 0
    %527 = vmatpush1.bf16.xpose.msra.mxu0 0
    %528 = vmatprep.subr.bf16.mxu0 0
    %529 = vmatpush1.bf16.xpose.msra.mxu0 0
    %530 = vmatprep.subr.bf16.mxu0 0
    %531 = vmatpush1.bf16.xpose.msra.mxu0 0
    %532 = vmatprep.subr.bf16.mxu0 0
    %533 = vmatpush1.bf16.xpose.msra.mxu0 %v470
    %534 = vmatprep.subr.bf16.mxu0 0
    %535 = vmatpush2.bf16.xpose.msra.mxu0 0
    %536 = vmatprep.subr.bf16.mxu0 0
    %537 = vmatpush2.bf16.xpose.msra.mxu0 0
    %538 = vmatprep.subr.bf16.mxu0 0
    %539 = vmatpush2.bf16.xpose.msra.mxu0 0
    %540 = vmatprep.subr.bf16.mxu0 0
    %541 = vmatpush2.bf16.xpose.msra.mxu0 0
    %542 = vmatprep.subr.bf16.mxu0 0
    %543 = vmatpush2.bf16.xpose.msra.mxu0 0
    %544 = vmatprep.subr.bf16.mxu0 0
    %545 = vmatpush2.bf16.xpose.msra.mxu0 0
    %546 = vmatprep.subr.bf16.mxu0 0
    %547 = vmatpush2.bf16.xpose.msra.mxu0 0
    %548 = vmatprep.subr.bf16.mxu0 0
    %549 = vmatpush2.bf16.xpose.msra.mxu0 0
    %550 = vmatprep.mubr.bf16.mxu0 0
    %551 = vmatmul.mubr.bf16.gmra.mxu0 %v516
    %v552 = vpop.f32.mrf.mxu0
    %v553 = vadd.f32 0.0, %v552
    %v554 = vpop.f32.mrf.mxu0
    %v555 = vpop.f32.mrf.mxu0
    %v556 = vpop.f32.mrf.mxu0
    %557 = vdwg.mxu0
    %559 = vset.pattern.permute.xlu0 64
    %560 = vperm.xlu0 %559, %v507
    %v561 = vpop.permute.xlu0 %560
    %564 = vset.pattern.permute.xlu0 64
    %565 = vperm.xlu0 %564, %v510
    %v566 = vpop.permute.xlu0 %565
    %v568 = vlaneseq
    %v569 = vshrl.u32 %v568, 7
    %v570 = vsub.s32 0, %v569
    %v571 = vrot.slane %v553, %v570
    %v572 = vadd.f32 %v561, %v571
    %v573 = vadd.f32 %v566, %v571
    %vm574 = vcmp.gt.f32.partialorder %v572, 0.0
    %vm575 = vcmp.gt.f32.partialorder %v573, 0.0
    %v576 = vmul.f32 %v572, 0.2
    %v577 = vmul.f32 %v573, 0.2
    %v578 = vsel %vm574, %v572, %v576
    %v579 = vsel %vm575, %v573, %v577
    %v580 = vadd.f32 %v578, %v60
    %v581 = vadd.f32 %v579, %v61
    %v582 = vsel %vm185, %v580, -inf
    %583 = vmax.xlane.f32.xlu0 %v582
    %v584 = vpop.xlane.xlu0 %583
    %v585 = vsel %vm185, %v581, -inf
    %586 = vmax.xlane.f32.xlu0 %v585
    %v587 = vpop.xlane.xlu0 %586
    %v588 = vsub.f32 %v580, %v584
    %v589 = vsub.f32 %v581, %v587
    %v590 = vmul.f32 %v588, 1.442695
    %v591 = vpow.pop %v590
    %v592 = vmul.f32 %v589, 1.442695
    %v593 = vpow.pop %v592
    %v594 = vsel %vm185, %v591, 0.0
    %595 = vadd.xlane.f32.xlu0 %v594
    %v596 = vpop.xlane.xlu0 %595
    %v597 = vsel %vm185, %v593, 0.0
    %598 = vadd.xlane.f32.xlu0 %v597
    %v599 = vpop.xlane.xlu0 %598
    %v600 = vrcp.pop %v596
    %v601 = vmul.f32 %v591, %v600
    %v602 = vrcp.pop %v599
    %v603 = vmul.f32 %v593, %v602
    %604 = vset.pattern.permute.xlu0 65
    %605 = vperm.xlu0 %604, %v507
    %v606 = vpop.permute.xlu0 %605
    %608 = vset.pattern.permute.xlu0 65
    %609 = vperm.xlu0 %608, %v510
    %v610 = vpop.permute.xlu0 %609
    %v612 = vlaneseq
    %v613 = vshrl.u32 %v612, 7
    %v614 = vsub.s32 1, %v613
    %v615 = vrot.slane %v553, %v614
    %v616 = vadd.f32 %v606, %v615
    %v617 = vadd.f32 %v610, %v615
    %vm618 = vcmp.gt.f32.partialorder %v616, 0.0
    %vm619 = vcmp.gt.f32.partialorder %v617, 0.0
    %v620 = vmul.f32 %v616, 0.2
    %v621 = vmul.f32 %v617, 0.2
    %v622 = vsel %vm618, %v616, %v620
    %v623 = vsel %vm619, %v617, %v621
    %v624 = vadd.f32 %v622, %v60
    %v625 = vadd.f32 %v623, %v61
    %v626 = vsel %vm185, %v624, -inf
    %627 = vmax.xlane.f32.xlu0 %v626
    %v628 = vpop.xlane.xlu0 %627
    %v629 = vsel %vm185, %v625, -inf
    %630 = vmax.xlane.f32.xlu0 %v629
    %v631 = vpop.xlane.xlu0 %630
    %v632 = vsub.f32 %v624, %v628
    %v633 = vsub.f32 %v625, %v631
    %v634 = vmul.f32 %v632, 1.442695
    %v635 = vpow.pop %v634
    %v636 = vmul.f32 %v633, 1.442695
    %v637 = vpow.pop %v636
    %v638 = vsel %vm185, %v635, 0.0
    %639 = vadd.xlane.f32.xlu0 %v638
    %v640 = vpop.xlane.xlu0 %639
    %v641 = vsel %vm185, %v637, 0.0
    %642 = vadd.xlane.f32.xlu0 %v641
    %v643 = vpop.xlane.xlu0 %642
    %v644 = vrcp.pop %v640
    %v645 = vmul.f32 %v635, %v644
    %v646 = vrcp.pop %v643
    %v647 = vmul.f32 %v637, %v646
    %648 = vset.pattern.permute.xlu0 66
    %649 = vperm.xlu0 %648, %v507
    %v650 = vpop.permute.xlu0 %649
    %652 = vset.pattern.permute.xlu0 66
    %653 = vperm.xlu0 %652, %v510
    %v654 = vpop.permute.xlu0 %653
    %v656 = vlaneseq
    %v657 = vshrl.u32 %v656, 7
    %v658 = vsub.s32 2, %v657
    %v659 = vrot.slane %v553, %v658
    %v660 = vadd.f32 %v650, %v659
    %v661 = vadd.f32 %v654, %v659
    %vm662 = vcmp.gt.f32.partialorder %v660, 0.0
    %vm663 = vcmp.gt.f32.partialorder %v661, 0.0
    %v664 = vmul.f32 %v660, 0.2
    %v665 = vmul.f32 %v661, 0.2
    %v666 = vsel %vm662, %v660, %v664
    %v667 = vsel %vm663, %v661, %v665
    %v668 = vadd.f32 %v666, %v60
    %v669 = vadd.f32 %v667, %v61
    %v670 = vsel %vm185, %v668, -inf
    %671 = vmax.xlane.f32.xlu0 %v670
    %v672 = vpop.xlane.xlu0 %671
    %v673 = vsel %vm185, %v669, -inf
    %674 = vmax.xlane.f32.xlu0 %v673
    %v675 = vpop.xlane.xlu0 %674
    %v676 = vsub.f32 %v668, %v672
    %v677 = vsub.f32 %v669, %v675
    %v678 = vmul.f32 %v676, 1.442695
    %v679 = vpow.pop %v678
    %v680 = vmul.f32 %v677, 1.442695
    %v681 = vpow.pop %v680
    %v682 = vsel %vm185, %v679, 0.0
    %683 = vadd.xlane.f32.xlu0 %v682
    %v684 = vpop.xlane.xlu0 %683
    %v685 = vsel %vm185, %v681, 0.0
    %686 = vadd.xlane.f32.xlu0 %v685
    %v687 = vpop.xlane.xlu0 %686
    %v688 = vrcp.pop %v684
    %v689 = vmul.f32 %v679, %v688
    %v690 = vrcp.pop %v687
    %v691 = vmul.f32 %v681, %v690
    %692 = vset.pattern.permute.xlu0 67
    %693 = vperm.xlu0 %692, %v507
    %v694 = vpop.permute.xlu0 %693
    %696 = vset.pattern.permute.xlu0 67
    %697 = vperm.xlu0 %696, %v510
    %v698 = vpop.permute.xlu0 %697
    %v700 = vlaneseq
    %v701 = vshrl.u32 %v700, 7
    %v702 = vsub.s32 3, %v701
    %v703 = vrot.slane %v553, %v702
    %v704 = vadd.f32 %v694, %v703
    %v705 = vadd.f32 %v698, %v703
    %vm706 = vcmp.gt.f32.partialorder %v704, 0.0
    %vm707 = vcmp.gt.f32.partialorder %v705, 0.0
    %v708 = vmul.f32 %v704, 0.2
    %v709 = vmul.f32 %v705, 0.2
    %v710 = vsel %vm706, %v704, %v708
    %v711 = vsel %vm707, %v705, %v709
    %v712 = vadd.f32 %v710, %v60
    %v713 = vadd.f32 %v711, %v61
    %v714 = vsel %vm185, %v712, -inf
    %715 = vmax.xlane.f32.xlu0 %v714
    %v716 = vpop.xlane.xlu0 %715
    %v717 = vsel %vm185, %v713, -inf
    %718 = vmax.xlane.f32.xlu0 %v717
    %v719 = vpop.xlane.xlu0 %718
    %v720 = vsub.f32 %v712, %v716
    %v721 = vsub.f32 %v713, %v719
    %v722 = vmul.f32 %v720, 1.442695
    %v723 = vpow.pop %v722
    %v724 = vmul.f32 %v721, 1.442695
    %v725 = vpow.pop %v724
    %v726 = vsel %vm185, %v723, 0.0
    %727 = vadd.xlane.f32.xlu0 %v726
    %v728 = vpop.xlane.xlu0 %727
    %v729 = vsel %vm185, %v725, 0.0
    %730 = vadd.xlane.f32.xlu0 %v729
    %v731 = vpop.xlane.xlu0 %730
    %v732 = vrcp.pop %v728
    %v733 = vmul.f32 %v723, %v732
    %v734 = vrcp.pop %v731
    %v735 = vmul.f32 %v725, %v734
    %738 = vrot.lane.b32.xlu0 %v645, 16
    %v739 = vpop.permute.xlu0 %738
    %740 = vrot.lane.b32.xlu0 %v647, 16
    %v741 = vpop.permute.xlu0 %740
    %746 = vrot.lane.b32.xlu0 %v689, 32
    %v747 = vpop.permute.xlu0 %746
    %748 = vrot.lane.b32.xlu0 %v691, 32
    %v749 = vpop.permute.xlu0 %748
    %754 = vrot.lane.b32.xlu0 %v733, 48
    %v755 = vpop.permute.xlu0 %754
    %756 = vrot.lane.b32.xlu0 %v735, 48
    %v757 = vpop.permute.xlu0 %756
    %v760 = vsel %vm185, %v601, %v739
    %v761 = vsel %vm185, %v603, %v741
    %v762 = vsel %vm71, %v760, %v747
    %v763 = vsel %vm71, %v761, %v749
    %v764 = vsel %vm368, %v762, %v755
    %v765 = vsel %vm368, %v763, %v757
    %v766 = vpack.c.bf16 %v765, %v764
    %v767 = vmul.f32 %v507, %v372
    %v768 = vmul.f32 %v510, %v373
    %v769 = vmul.f32 %v507, %v374
    %v770 = vmul.f32 %v510, %v375
    %v771 = vmul.f32 %v507, %v376
    %v772 = vmul.f32 %v510, %v377
    %v773 = vmul.f32 %v507, %v378
    %v774 = vmul.f32 %v510, %v379
    %v775 = vpack.c.bf16 %v768, %v767
    %v776 = vpack.c.bf16 %v770, %v769
    %v777 = vpack.c.bf16 %v772, %v771
    %v778 = vpack.c.bf16 %v774, %v773
    %779 = vrot.lane.b32.xlu0 %v507, 96
    %v780 = vpop.permute.xlu0 %779
    %781 = vrot.lane.b32.xlu0 %v510, 96
    %v782 = vpop.permute.xlu0 %781
    %v786 = vsel %vm398, %v766, 0
    %788 = vmatprep.subr.bf16.mxu0 0
    %789 = vmatpush1.bf16.msra.mxu0 0
    %790 = vmatprep.subr.bf16.mxu0 0
    %791 = vmatpush1.bf16.msra.mxu0 0
    %792 = vmatprep.subr.bf16.mxu0 0
    %793 = vmatpush1.bf16.msra.mxu0 0
    %794 = vmatprep.subr.bf16.mxu0 0
    %795 = vmatpush1.bf16.msra.mxu0 0
    %796 = vmatprep.subr.bf16.mxu0 0
    %797 = vmatpush1.bf16.msra.mxu0 %v778
    %798 = vmatprep.subr.bf16.mxu0 0
    %799 = vmatpush1.bf16.msra.mxu0 %v777
    %800 = vmatprep.subr.bf16.mxu0 0
    %801 = vmatpush1.bf16.msra.mxu0 %v776
    %802 = vmatprep.subr.bf16.mxu0 0
    %803 = vmatpush1.bf16.msra.mxu0 %v775
    %804 = vmatprep.subr.bf16.mxu0 0
    %805 = vmatpush2.bf16.msra.mxu0 0
    %806 = vmatprep.subr.bf16.mxu0 0
    %807 = vmatpush2.bf16.msra.mxu0 0
    %808 = vmatprep.subr.bf16.mxu0 0
    %809 = vmatpush2.bf16.msra.mxu0 0
    %810 = vmatprep.subr.bf16.mxu0 0
    %811 = vmatpush2.bf16.msra.mxu0 0
    %812 = vmatprep.subr.bf16.mxu0 0
    %813 = vmatpush2.bf16.msra.mxu0 0
    %814 = vmatprep.subr.bf16.mxu0 0
    %815 = vmatpush2.bf16.msra.mxu0 0
    %816 = vmatprep.subr.bf16.mxu0 0
    %817 = vmatpush2.bf16.msra.mxu0 0
    %818 = vmatprep.subr.bf16.mxu0 0
    %819 = vmatpush2.bf16.msra.mxu0 0
    %820 = vmatprep.mubr.bf16.mxu0 0
    %821 = vmatmul.mubr.bf16.gmra.mxu0 %v786
    %v822 = vpop.f32.mrf.mxu0
    %v823 = vadd.f32 %v780, %v822
    %v824 = vpop.f32.mrf.mxu0
    %v825 = vpop.f32.mrf.mxu0
    %v826 = vadd.f32 %v782, %v825
    %v827 = vpop.f32.mrf.mxu0
    %828 = vdwg.mxu0
    %v829 = vld [vmem:[#allocation7 + $0x58] sm:$0x1]
    %v830 = vlaneseq
    %v831 = vshrl.u32 %v830, 7
    %v832 = vsub.s32 0, %v831
    %v833 = vrot.slane %v829, %v832
    %v834 = vadd.f32 %v823, %v833
    %v835 = vadd.f32 %v826, %v833
    %vm836 = vcmp.gt.f32.partialorder %v834, 0.0
    %vm837 = vcmp.gt.f32.partialorder %v835, 0.0
    %v838 = vmin.f32 %v834, 0.0
    %v839 = vmin.f32 %v835, 0.0
    %v840 = vmul.f32 %v838, 1.442695
    %v841 = vpow.pop %v840
    %v842 = vmul.f32 %v839, 1.442695
    %v843 = vpow.pop %v842
    %v844 = vsub.f32 %v841, 1.0
    %v845 = vsub.f32 %v843, 1.0
    %v846 = vsel %vm836, %v834, %v844
    %v847 = vsel %vm837, %v835, %v845
    %848 = vst.msk [vmem:[#allocation9] sm:$0xff] %vm71, %v846
    %849 = vst.msk [vmem:[#allocation9 + $0x8] sm:$0xff] %vm71, %v847
    %v850 = vpack.c.bf16 %v847, %v846
    %v851 = vld [vmem:[#allocation7 + $0x60] sm:$0xff]
    %v852 = vld [vmem:[#allocation7 + $0x68] sm:$0xff]
    %v853 = vld [vmem:[#allocation7 + $0x70] sm:$0xff]
    %v854 = vld [vmem:[#allocation7 + $0x78] sm:$0xff]
    %v855 = vpack.c.bf16 %v852, %v851
    %v856 = vpack.c.bf16 %v854, %v853
    %v858 = vsel %vm71, %v850, 0
    %860 = vmatprep.subr.bf16.mxu0 0
    %861 = vmatpush1.bf16.msra.mxu0 0
    %862 = vmatprep.subr.bf16.mxu0 0
    %863 = vmatpush1.bf16.msra.mxu0 0
    %864 = vmatprep.subr.bf16.mxu0 0
    %865 = vmatpush1.bf16.msra.mxu0 0
    %866 = vmatprep.subr.bf16.mxu0 0
    %867 = vmatpush1.bf16.msra.mxu0 0
    %868 = vmatprep.subr.bf16.mxu0 0
    %869 = vmatpush1.bf16.msra.mxu0 0
    %870 = vmatprep.subr.bf16.mxu0 0
    %871 = vmatpush1.bf16.msra.mxu0 0
    %872 = vmatprep.subr.bf16.mxu0 0
    %873 = vmatpush1.bf16.msra.mxu0 %v856
    %874 = vmatprep.subr.bf16.mxu0 0
    %875 = vmatpush1.bf16.msra.mxu0 %v855
    %876 = vmatprep.subr.bf16.mxu0 0
    %877 = vmatpush2.bf16.msra.mxu0 0
    %878 = vmatprep.subr.bf16.mxu0 0
    %879 = vmatpush2.bf16.msra.mxu0 0
    %880 = vmatprep.subr.bf16.mxu0 0
    %881 = vmatpush2.bf16.msra.mxu0 0
    %882 = vmatprep.subr.bf16.mxu0 0
    %883 = vmatpush2.bf16.msra.mxu0 0
    %884 = vmatprep.subr.bf16.mxu0 0
    %885 = vmatpush2.bf16.msra.mxu0 0
    %886 = vmatprep.subr.bf16.mxu0 0
    %887 = vmatpush2.bf16.msra.mxu0 0
    %888 = vmatprep.subr.bf16.mxu0 0
    %889 = vmatpush2.bf16.msra.mxu0 0
    %890 = vmatprep.subr.bf16.mxu0 0
    %891 = vmatpush2.bf16.msra.mxu0 0
    %892 = vmatprep.mubr.bf16.mxu0 0
    %893 = vmatmul.mubr.bf16.gmra.mxu0 %v858
    %v894 = vpop.f32.mrf.mxu0
    %v895 = vadd.f32 0.0, %v894
    %v896 = vpop.f32.mrf.mxu0
    %v897 = vpop.f32.mrf.mxu0
    %v898 = vadd.f32 0.0, %v897
    %v899 = vpop.f32.mrf.mxu0
    %900 = vdwg.mxu0
    %v901 = vld [vmem:[#allocation7 + $0x80] sm:$0xff]
    %v902 = vpack.c.bf16 %v901, %v901
    %v904 = vsel %vm71, %v902, 0
    %906 = vmatprep.subr.bf16.mxu0 0
    %907 = vmatpush1.bf16.xpose.msra.mxu0 0
    %908 = vmatprep.subr.bf16.mxu0 0
    %909 = vmatpush1.bf16.xpose.msra.mxu0 0
    %910 = vmatprep.subr.bf16.mxu0 0
    %911 = vmatpush1.bf16.xpose.msra.mxu0 0
    %912 = vmatprep.subr.bf16.mxu0 0
    %913 = vmatpush1.bf16.xpose.msra.mxu0 0
    %914 = vmatprep.subr.bf16.mxu0 0
    %915 = vmatpush1.bf16.xpose.msra.mxu0 0
    %916 = vmatprep.subr.bf16.mxu0 0
    %917 = vmatpush1.bf16.xpose.msra.mxu0 0
    %918 = vmatprep.subr.bf16.mxu0 0
    %919 = vmatpush1.bf16.xpose.msra.mxu0 0
    %920 = vmatprep.subr.bf16.mxu0 0
    %921 = vmatpush1.bf16.xpose.msra.mxu0 %v858
    %922 = vmatprep.subr.bf16.mxu0 0
    %923 = vmatpush2.bf16.xpose.msra.mxu0 0
    %924 = vmatprep.subr.bf16.mxu0 0
    %925 = vmatpush2.bf16.xpose.msra.mxu0 0
    %926 = vmatprep.subr.bf16.mxu0 0
    %927 = vmatpush2.bf16.xpose.msra.mxu0 0
    %928 = vmatprep.subr.bf16.mxu0 0
    %929 = vmatpush2.bf16.xpose.msra.mxu0 0
    %930 = vmatprep.subr.bf16.mxu0 0
    %931 = vmatpush2.bf16.xpose.msra.mxu0 0
    %932 = vmatprep.subr.bf16.mxu0 0
    %933 = vmatpush2.bf16.xpose.msra.mxu0 0
    %934 = vmatprep.subr.bf16.mxu0 0
    %935 = vmatpush2.bf16.xpose.msra.mxu0 0
    %936 = vmatprep.subr.bf16.mxu0 0
    %937 = vmatpush2.bf16.xpose.msra.mxu0 0
    %938 = vmatprep.mubr.bf16.mxu0 0
    %939 = vmatmul.mubr.bf16.gmra.mxu0 %v904
    %v940 = vpop.f32.mrf.mxu0
    %v941 = vadd.f32 0.0, %v940
    %v942 = vpop.f32.mrf.mxu0
    %v943 = vpop.f32.mrf.mxu0
    %v944 = vpop.f32.mrf.mxu0
    %945 = vdwg.mxu0
    %947 = vset.pattern.permute.xlu0 42
    %948 = vperm.xlu0 %947, %v895
    %v949 = vpop.permute.xlu0 %948
    %952 = vset.pattern.permute.xlu0 42
    %953 = vperm.xlu0 %952, %v898
    %v954 = vpop.permute.xlu0 %953
    %v956 = vlaneseq
    %v957 = vshrl.u32 %v956, 7
    %v958 = vsub.s32 0, %v957
    %v959 = vrot.slane %v941, %v958
    %v960 = vadd.f32 %v949, %v959
    %v961 = vadd.f32 %v954, %v959
    %vm962 = vcmp.gt.f32.partialorder %v960, 0.0
    %vm963 = vcmp.gt.f32.partialorder %v961, 0.0
    %v964 = vmul.f32 %v960, 0.2
    %v965 = vmul.f32 %v961, 0.2
    %v966 = vsel %vm962, %v960, %v964
    %v967 = vsel %vm963, %v961, %v965
    %v968 = vadd.f32 %v966, %v60
    %v969 = vadd.f32 %v967, %v61
    %v970 = vsel %vm185, %v968, -inf
    %971 = vmax.xlane.f32.xlu0 %v970
    %v972 = vpop.xlane.xlu0 %971
    %v973 = vsel %vm185, %v969, -inf
    %974 = vmax.xlane.f32.xlu0 %v973
    %v975 = vpop.xlane.xlu0 %974
    %v976 = vsub.f32 %v968, %v972
    %v977 = vsub.f32 %v969, %v975
    %v978 = vmul.f32 %v976, 1.442695
    %v979 = vpow.pop %v978
    %v980 = vmul.f32 %v977, 1.442695
    %v981 = vpow.pop %v980
    %v982 = vsel %vm185, %v979, 0.0
    %983 = vadd.xlane.f32.xlu0 %v982
    %v984 = vpop.xlane.xlu0 %983
    %v985 = vsel %vm185, %v981, 0.0
    %986 = vadd.xlane.f32.xlu0 %v985
    %v987 = vpop.xlane.xlu0 %986
    %v988 = vrcp.pop %v984
    %v989 = vmul.f32 %v979, %v988
    %v990 = vrcp.pop %v987
    %v991 = vmul.f32 %v981, %v990
    %992 = vset.pattern.permute.xlu0 43
    %993 = vperm.xlu0 %992, %v895
    %v994 = vpop.permute.xlu0 %993
    %996 = vset.pattern.permute.xlu0 43
    %997 = vperm.xlu0 %996, %v898
    %v998 = vpop.permute.xlu0 %997
    %v1000 = vlaneseq
    %v1001 = vshrl.u32 %v1000, 7
    %v1002 = vsub.s32 1, %v1001
    %v1003 = vrot.slane %v941, %v1002
    %v1004 = vadd.f32 %v994, %v1003
    %v1005 = vadd.f32 %v998, %v1003
    %vm1006 = vcmp.gt.f32.partialorder %v1004, 0.0
    %vm1007 = vcmp.gt.f32.partialorder %v1005, 0.0
    %v1008 = vmul.f32 %v1004, 0.2
    %v1009 = vmul.f32 %v1005, 0.2
    %v1010 = vsel %vm1006, %v1004, %v1008
    %v1011 = vsel %vm1007, %v1005, %v1009
    %v1012 = vadd.f32 %v1010, %v60
    %v1013 = vadd.f32 %v1011, %v61
    %v1014 = vsel %vm185, %v1012, -inf
    %1015 = vmax.xlane.f32.xlu0 %v1014
    %v1016 = vpop.xlane.xlu0 %1015
    %v1017 = vsel %vm185, %v1013, -inf
    %1018 = vmax.xlane.f32.xlu0 %v1017
    %v1019 = vpop.xlane.xlu0 %1018
    %v1020 = vsub.f32 %v1012, %v1016
    %v1021 = vsub.f32 %v1013, %v1019
    %v1022 = vmul.f32 %v1020, 1.442695
    %v1023 = vpow.pop %v1022
    %v1024 = vmul.f32 %v1021, 1.442695
    %v1025 = vpow.pop %v1024
    %v1026 = vsel %vm185, %v1023, 0.0
    %1027 = vadd.xlane.f32.xlu0 %v1026
    %v1028 = vpop.xlane.xlu0 %1027
    %v1029 = vsel %vm185, %v1025, 0.0
    %1030 = vadd.xlane.f32.xlu0 %v1029
    %v1031 = vpop.xlane.xlu0 %1030
    %v1032 = vrcp.pop %v1028
    %v1033 = vmul.f32 %v1023, %v1032
    %v1034 = vrcp.pop %v1031
    %v1035 = vmul.f32 %v1025, %v1034
    %1036 = vset.pattern.permute.xlu0 44
    %1037 = vperm.xlu0 %1036, %v895
    %v1038 = vpop.permute.xlu0 %1037
    %1040 = vset.pattern.permute.xlu0 44
    %1041 = vperm.xlu0 %1040, %v898
    %v1042 = vpop.permute.xlu0 %1041
    %v1044 = vlaneseq
    %v1045 = vshrl.u32 %v1044, 7
    %v1046 = vsub.s32 2, %v1045
    %v1047 = vrot.slane %v941, %v1046
    %v1048 = vadd.f32 %v1038, %v1047
    %v1049 = vadd.f32 %v1042, %v1047
    %vm1050 = vcmp.gt.f32.partialorder %v1048, 0.0
    %vm1051 = vcmp.gt.f32.partialorder %v1049, 0.0
    %v1052 = vmul.f32 %v1048, 0.2
    %v1053 = vmul.f32 %v1049, 0.2
    %v1054 = vsel %vm1050, %v1048, %v1052
    %v1055 = vsel %vm1051, %v1049, %v1053
    %v1056 = vadd.f32 %v1054, %v60
    %v1057 = vadd.f32 %v1055, %v61
    %v1058 = vsel %vm185, %v1056, -inf
    %1059 = vmax.xlane.f32.xlu0 %v1058
    %v1060 = vpop.xlane.xlu0 %1059
    %v1061 = vsel %vm185, %v1057, -inf
    %1062 = vmax.xlane.f32.xlu0 %v1061
    %v1063 = vpop.xlane.xlu0 %1062
    %v1064 = vsub.f32 %v1056, %v1060
    %v1065 = vsub.f32 %v1057, %v1063
    %v1066 = vmul.f32 %v1064, 1.442695
    %v1067 = vpow.pop %v1066
    %v1068 = vmul.f32 %v1065, 1.442695
    %v1069 = vpow.pop %v1068
    %v1070 = vsel %vm185, %v1067, 0.0
    %1071 = vadd.xlane.f32.xlu0 %v1070
    %v1072 = vpop.xlane.xlu0 %1071
    %v1073 = vsel %vm185, %v1069, 0.0
    %1074 = vadd.xlane.f32.xlu0 %v1073
    %v1075 = vpop.xlane.xlu0 %1074
    %v1076 = vrcp.pop %v1072
    %v1077 = vmul.f32 %v1067, %v1076
    %v1078 = vrcp.pop %v1075
    %v1079 = vmul.f32 %v1069, %v1078
    %1080 = vset.pattern.permute.xlu0 45
    %1081 = vperm.xlu0 %1080, %v895
    %v1082 = vpop.permute.xlu0 %1081
    %1084 = vset.pattern.permute.xlu0 45
    %1085 = vperm.xlu0 %1084, %v898
    %v1086 = vpop.permute.xlu0 %1085
    %v1088 = vlaneseq
    %v1089 = vshrl.u32 %v1088, 7
    %v1090 = vsub.s32 3, %v1089
    %v1091 = vrot.slane %v941, %v1090
    %v1092 = vadd.f32 %v1082, %v1091
    %v1093 = vadd.f32 %v1086, %v1091
    %vm1094 = vcmp.gt.f32.partialorder %v1092, 0.0
    %vm1095 = vcmp.gt.f32.partialorder %v1093, 0.0
    %v1096 = vmul.f32 %v1092, 0.2
    %v1097 = vmul.f32 %v1093, 0.2
    %v1098 = vsel %vm1094, %v1092, %v1096
    %v1099 = vsel %vm1095, %v1093, %v1097
    %v1100 = vadd.f32 %v1098, %v60
    %v1101 = vadd.f32 %v1099, %v61
    %v1102 = vsel %vm185, %v1100, -inf
    %1103 = vmax.xlane.f32.xlu0 %v1102
    %v1104 = vpop.xlane.xlu0 %1103
    %v1105 = vsel %vm185, %v1101, -inf
    %1106 = vmax.xlane.f32.xlu0 %v1105
    %v1107 = vpop.xlane.xlu0 %1106
    %v1108 = vsub.f32 %v1100, %v1104
    %v1109 = vsub.f32 %v1101, %v1107
    %v1110 = vmul.f32 %v1108, 1.442695
    %v1111 = vpow.pop %v1110
    %v1112 = vmul.f32 %v1109, 1.442695
    %v1113 = vpow.pop %v1112
    %v1114 = vsel %vm185, %v1111, 0.0
    %1115 = vadd.xlane.f32.xlu0 %v1114
    %v1116 = vpop.xlane.xlu0 %1115
    %v1117 = vsel %vm185, %v1113, 0.0
    %1118 = vadd.xlane.f32.xlu0 %v1117
    %v1119 = vpop.xlane.xlu0 %1118
    %v1120 = vrcp.pop %v1116
    %v1121 = vmul.f32 %v1111, %v1120
    %v1122 = vrcp.pop %v1119
    %v1123 = vmul.f32 %v1113, %v1122
    %1124 = vset.pattern.permute.xlu0 46
    %1125 = vperm.xlu0 %1124, %v895
    %v1126 = vpop.permute.xlu0 %1125
    %1128 = vset.pattern.permute.xlu0 46
    %1129 = vperm.xlu0 %1128, %v898
    %v1130 = vpop.permute.xlu0 %1129
    %v1132 = vlaneseq
    %v1133 = vshrl.u32 %v1132, 7
    %v1134 = vsub.s32 4, %v1133
    %v1135 = vrot.slane %v941, %v1134
    %v1136 = vadd.f32 %v1126, %v1135
    %v1137 = vadd.f32 %v1130, %v1135
    %vm1138 = vcmp.gt.f32.partialorder %v1136, 0.0
    %vm1139 = vcmp.gt.f32.partialorder %v1137, 0.0
    %v1140 = vmul.f32 %v1136, 0.2
    %v1141 = vmul.f32 %v1137, 0.2
    %v1142 = vsel %vm1138, %v1136, %v1140
    %v1143 = vsel %vm1139, %v1137, %v1141
    %v1144 = vadd.f32 %v1142, %v60
    %v1145 = vadd.f32 %v1143, %v61
    %v1146 = vsel %vm185, %v1144, -inf
    %1147 = vmax.xlane.f32.xlu0 %v1146
    %v1148 = vpop.xlane.xlu0 %1147
    %v1149 = vsel %vm185, %v1145, -inf
    %1150 = vmax.xlane.f32.xlu0 %v1149
    %v1151 = vpop.xlane.xlu0 %1150
    %v1152 = vsub.f32 %v1144, %v1148
    %v1153 = vsub.f32 %v1145, %v1151
    %v1154 = vmul.f32 %v1152, 1.442695
    %v1155 = vpow.pop %v1154
    %v1156 = vmul.f32 %v1153, 1.442695
    %v1157 = vpow.pop %v1156
    %v1158 = vsel %vm185, %v1155, 0.0
    %1159 = vadd.xlane.f32.xlu0 %v1158
    %v1160 = vpop.xlane.xlu0 %1159
    %v1161 = vsel %vm185, %v1157, 0.0
    %1162 = vadd.xlane.f32.xlu0 %v1161
    %v1163 = vpop.xlane.xlu0 %1162
    %v1164 = vrcp.pop %v1160
    %v1165 = vmul.f32 %v1155, %v1164
    %v1166 = vrcp.pop %v1163
    %v1167 = vmul.f32 %v1157, %v1166
    %1168 = vset.pattern.permute.xlu0 47
    %1169 = vperm.xlu0 %1168, %v895
    %v1170 = vpop.permute.xlu0 %1169
    %1172 = vset.pattern.permute.xlu0 47
    %1173 = vperm.xlu0 %1172, %v898
    %v1174 = vpop.permute.xlu0 %1173
    %v1176 = vlaneseq
    %v1177 = vshrl.u32 %v1176, 7
    %v1178 = vsub.s32 5, %v1177
    %v1179 = vrot.slane %v941, %v1178
    %v1180 = vadd.f32 %v1170, %v1179
    %v1181 = vadd.f32 %v1174, %v1179
    %vm1182 = vcmp.gt.f32.partialorder %v1180, 0.0
    %vm1183 = vcmp.gt.f32.partialorder %v1181, 0.0
    %v1184 = vmul.f32 %v1180, 0.2
    %v1185 = vmul.f32 %v1181, 0.2
    %v1186 = vsel %vm1182, %v1180, %v1184
    %v1187 = vsel %vm1183, %v1181, %v1185
    %v1188 = vadd.f32 %v1186, %v60
    %v1189 = vadd.f32 %v1187, %v61
    %v1190 = vsel %vm185, %v1188, -inf
    %1191 = vmax.xlane.f32.xlu0 %v1190
    %v1192 = vpop.xlane.xlu0 %1191
    %v1193 = vsel %vm185, %v1189, -inf
    %1194 = vmax.xlane.f32.xlu0 %v1193
    %v1195 = vpop.xlane.xlu0 %1194
    %v1196 = vsub.f32 %v1188, %v1192
    %v1197 = vsub.f32 %v1189, %v1195
    %v1198 = vmul.f32 %v1196, 1.442695
    %v1199 = vpow.pop %v1198
    %v1200 = vmul.f32 %v1197, 1.442695
    %v1201 = vpow.pop %v1200
    %v1202 = vsel %vm185, %v1199, 0.0
    %1203 = vadd.xlane.f32.xlu0 %v1202
    %v1204 = vpop.xlane.xlu0 %1203
    %v1205 = vsel %vm185, %v1201, 0.0
    %1206 = vadd.xlane.f32.xlu0 %v1205
    %v1207 = vpop.xlane.xlu0 %1206
    %v1208 = vrcp.pop %v1204
    %v1209 = vmul.f32 %v1199, %v1208
    %v1210 = vrcp.pop %v1207
    %v1211 = vmul.f32 %v1201, %v1210
    %1214 = vrot.lane.b32.xlu0 %v1033, 16
    %v1215 = vpop.permute.xlu0 %1214
    %1216 = vrot.lane.b32.xlu0 %v1035, 16
    %v1217 = vpop.permute.xlu0 %1216
    %1222 = vrot.lane.b32.xlu0 %v1077, 32
    %v1223 = vpop.permute.xlu0 %1222
    %1224 = vrot.lane.b32.xlu0 %v1079, 32
    %v1225 = vpop.permute.xlu0 %1224
    %1230 = vrot.lane.b32.xlu0 %v1121, 48
    %v1231 = vpop.permute.xlu0 %1230
    %1232 = vrot.lane.b32.xlu0 %v1123, 48
    %v1233 = vpop.permute.xlu0 %1232
    %1238 = vrot.lane.b32.xlu0 %v1165, 64
    %v1239 = vpop.permute.xlu0 %1238
    %1240 = vrot.lane.b32.xlu0 %v1167, 64
    %v1241 = vpop.permute.xlu0 %1240
    %1246 = vrot.lane.b32.xlu0 %v1209, 80
    %v1247 = vpop.permute.xlu0 %1246
    %1248 = vrot.lane.b32.xlu0 %v1211, 80
    %v1249 = vpop.permute.xlu0 %1248
    %v1252 = vsel %vm185, %v989, %v1215
    %v1253 = vsel %vm185, %v991, %v1217
    %v1254 = vsel %vm71, %v1252, %v1223
    %v1255 = vsel %vm71, %v1253, %v1225
    %v1256 = vsel %vm368, %v1254, %v1231
    %v1257 = vsel %vm368, %v1255, %v1233
    %v1258 = vsel %vm398, %v1256, %v1239
    %v1259 = vsel %vm398, %v1257, %v1241
    %vm1260 = vcmask 654336
    %v1261 = vsel %vm1260, %v1258, %v1247
    %v1262 = vsel %vm1260, %v1259, %v1249
    %v1263 = vpack.c.bf16 %v1262, %v1261
    %v1264 = vld [vmem:[#allocation7 + $0xd0] sm:$0xff]
    %v1265 = vld [vmem:[#allocation7 + $0xd8] sm:$0xff]
    %v1266 = vld [vmem:[#allocation7 + $0xe0] sm:$0xff]
    %v1267 = vld [vmem:[#allocation7 + $0xe8] sm:$0xff]
    %v1268 = vld [vmem:[#allocation7 + $0xf0] sm:$0xff]
    %v1269 = vld [vmem:[#allocation7 + $0xf8] sm:$0xff]
    %v1270 = vld [vmem:[#allocation7 + $0x100] sm:$0xff]
    %v1271 = vld [vmem:[#allocation7 + $0x108] sm:$0xff]
    %v1272 = vld [vmem:[#allocation7 + $0x110] sm:$0xff]
    %v1273 = vld [vmem:[#allocation7 + $0x118] sm:$0xff]
    %v1274 = vld [vmem:[#allocation7 + $0x120] sm:$0xff]
    %v1275 = vld [vmem:[#allocation7 + $0x128] sm:$0xff]
    %v1276 = vmul.f32 %v895, %v1264
    %v1277 = vmul.f32 %v898, %v1265
    %v1278 = vmul.f32 %v895, %v1266
    %v1279 = vmul.f32 %v898, %v1267
    %v1280 = vmul.f32 %v895, %v1268
    %v1281 = vmul.f32 %v898, %v1269
    %v1282 = vmul.f32 %v895, %v1270
    %v1283 = vmul.f32 %v898, %v1271
    %v1284 = vmul.f32 %v895, %v1272
    %v1285 = vmul.f32 %v898, %v1273
    %v1286 = vmul.f32 %v895, %v1274
    %v1287 = vmul.f32 %v898, %v1275
    %v1288 = vpack.c.bf16 %v1277, %v1276
    %v1289 = vpack.c.bf16 %v1279, %v1278
    %v1290 = vpack.c.bf16 %v1281, %v1280
    %v1291 = vpack.c.bf16 %v1283, %v1282
    %v1292 = vpack.c.bf16 %v1285, %v1284
    %v1293 = vpack.c.bf16 %v1287, %v1286
    %vm1294 = vcmask 785408
    %v1296 = vsel %vm1294, %v1263, 0
    %1298 = vmatprep.subr.bf16.mxu0 0
    %1299 = vmatpush1.bf16.msra.mxu0 0
    %1300 = vmatprep.subr.bf16.mxu0 0
    %1301 = vmatpush1.bf16.msra.mxu0 0
    %1302 = vmatprep.subr.bf16.mxu0 0
    %1303 = vmatpush1.bf16.msra.mxu0 %v1293
    %1304 = vmatprep.subr.bf16.mxu0 0
    %1305 = vmatpush1.bf16.msra.mxu0 %v1292
    %1306 = vmatprep.subr.bf16.mxu0 0
    %1307 = vmatpush1.bf16.msra.mxu0 %v1291
    %1308 = vmatprep.subr.bf16.mxu0 0
    %1309 = vmatpush1.bf16.msra.mxu0 %v1290
    %1310 = vmatprep.subr.bf16.mxu0 0
    %1311 = vmatpush1.bf16.msra.mxu0 %v1289
    %1312 = vmatprep.subr.bf16.mxu0 0
    %1313 = vmatpush1.bf16.msra.mxu0 %v1288
    %1314 = vmatprep.subr.bf16.mxu0 0
    %1315 = vmatpush2.bf16.msra.mxu0 0
    %1316 = vmatprep.subr.bf16.mxu0 0
    %1317 = vmatpush2.bf16.msra.mxu0 0
    %1318 = vmatprep.subr.bf16.mxu0 0
    %1319 = vmatpush2.bf16.msra.mxu0 0
    %1320 = vmatprep.subr.bf16.mxu0 0
    %1321 = vmatpush2.bf16.msra.mxu0 0
    %1322 = vmatprep.subr.bf16.mxu0 0
    %1323 = vmatpush2.bf16.msra.mxu0 0
    %1324 = vmatprep.subr.bf16.mxu0 0
    %1325 = vmatpush2.bf16.msra.mxu0 0
    %1326 = vmatprep.subr.bf16.mxu0 0
    %1327 = vmatpush2.bf16.msra.mxu0 0
    %1328 = vmatprep.subr.bf16.mxu0 0
    %1329 = vmatpush2.bf16.msra.mxu0 0
    %1330 = vmatprep.mubr.bf16.mxu0 0
    %1331 = vmatmul.mubr.bf16.gmra.mxu0 %v1296
    %v1332 = vpop.f32.mrf.mxu0
    %v1333 = vadd.f32 0.0, %v1332
    %v1334 = vpop.f32.mrf.mxu0
    %v1335 = vpop.f32.mrf.mxu0
    %v1336 = vadd.f32 0.0, %v1335
    %v1337 = vpop.f32.mrf.mxu0
    %1338 = vdwg.mxu0
    %vm1339 = vcmask 293888
    %v1340 = vsel %vm1339, %v1333, %v895
    %v1341 = vsel %vm1339, %v1336, %v898
    %vm1342 = vcmask 343040
    %v1343 = vsel %vm1342, %v1340, %v895
    %v1344 = vsel %vm1342, %v1341, %v898
    %v1345 = vld [vmem:[#allocation7 + $0x130] sm:$0xff]
    %v1346 = vld [vmem:[#allocation7 + $0x138] sm:$0xff]
    %v1347 = vld [vmem:[#allocation7 + $0x140] sm:$0xff]
    %v1348 = vld [vmem:[#allocation7 + $0x148] sm:$0xff]
    %v1349 = vld [vmem:[#allocation7 + $0x150] sm:$0xff]
    %v1350 = vld [vmem:[#allocation7 + $0x158] sm:$0xff]
    %v1351 = vpack.c.bf16 %v1346, %v1345
    %v1352 = vpack.c.bf16 %v1348, %v1347
    %v1353 = vpack.c.bf16 %v1350, %v1349
    %v1354 = vpack.c.bf16 %v1344, %v1343
    %v1355 = vld [vmem:[#allocation7 + $0x88] sm:$0x1]
    %v1356 = vlaneseq
    %v1357 = vshrl.u32 %v1356, 7
    %v1358 = vsub.s32 0, %v1357
    %v1359 = vrot.slane %v1355, %v1358
    %v1361 = vsel %vm368, %v1354, 0
    %1363 = vmatprep.subr.bf16.mxu0 0
    %1364 = vmatpush1.bf16.msra.mxu0 0
    %1365 = vmatprep.subr.bf16.mxu0 0
    %1366 = vmatpush1.bf16.msra.mxu0 0
    %1367 = vmatprep.subr.bf16.mxu0 0
    %1368 = vmatpush1.bf16.msra.mxu0 0
    %1369 = vmatprep.subr.bf16.mxu0 0
    %1370 = vmatpush1.bf16.msra.mxu0 0
    %1371 = vmatprep.subr.bf16.mxu0 0
    %1372 = vmatpush1.bf16.msra.mxu0 0
    %1373 = vmatprep.subr.bf16.mxu0 0
    %1374 = vmatpush1.bf16.msra.mxu0 %v1353
    %1375 = vmatprep.subr.bf16.mxu0 0
    %1376 = vmatpush1.bf16.msra.mxu0 %v1352
    %1377 = vmatprep.subr.bf16.mxu0 0
    %1378 = vmatpush1.bf16.msra.mxu0 %v1351
    %1379 = vmatprep.subr.bf16.mxu0 0
    %1380 = vmatpush2.bf16.msra.mxu0 0
    %1381 = vmatprep.subr.bf16.mxu0 0
    %1382 = vmatpush2.bf16.msra.mxu0 0
    %1383 = vmatprep.subr.bf16.mxu0 0
    %1384 = vmatpush2.bf16.msra.mxu0 0
    %1385 = vmatprep.subr.bf16.mxu0 0
    %1386 = vmatpush2.bf16.msra.mxu0 0
    %1387 = vmatprep.subr.bf16.mxu0 0
    %1388 = vmatpush2.bf16.msra.mxu0 0
    %1389 = vmatprep.subr.bf16.mxu0 0
    %1390 = vmatpush2.bf16.msra.mxu0 0
    %1391 = vmatprep.subr.bf16.mxu0 0
    %1392 = vmatpush2.bf16.msra.mxu0 0
    %1393 = vmatprep.subr.bf16.mxu0 0
    %1394 = vmatpush2.bf16.msra.mxu0 0
    %1395 = vmatprep.mubr.bf16.mxu0 0
    %1396 = vmatmul.mubr.bf16.gmra.mxu0 %v1361
    %v1397 = vpop.f32.mrf.mxu0
    %v1398 = vadd.f32 %v1359, %v1397
    %v1399 = vpop.f32.mrf.mxu0
    %v1400 = vpop.f32.mrf.mxu0
    %v1401 = vadd.f32 %v1359, %v1400
    %v1402 = vpop.f32.mrf.mxu0
    %1403 = vdwg.mxu0
    %1404 = vst [vmem:[#allocation8] sm:$0xff] %v1398
    %1405 = vst [vmem:[#allocation8 + $0x8] sm:$0xff] %v1401
    // Predicated region
    $region26: #{tpu_custom_call.1} parent=1 // pred_check
      _
    $region27: #{tpu_custom_call.1} parent=1 // pred_check_branch
      %1407 = sbr.rel (0) target = $region29
    $region28: #{tpu_custom_call.1} parent=1 // pred_region
      %s1409 = ssub.s32 256, 256
      %1410 = vsyncadd [#allocation4], %s1409
      %s1411 = sshll.u32 [#allocation8], 4
      %s1412 = int_to_ptr.vmem [resolvable:$true] %s1411
      %1417 = dma.vmem_to_hbm [thread:$0]  %s1412, 256, %s3, [#allocation4], 128, 128, 8
    $region29: #{tpu_custom_call.1} parent=1 // pred_fallthru
      _
    // Predicated region
    $region30: #{tpu_custom_call.1} parent=1 // pred_check
      _
    $region31: #{tpu_custom_call.1} parent=1 // pred_check_branch
      %1419 = sbr.rel (0) target = $region33
    $region32: #{tpu_custom_call.1} parent=1 // pred_region
      %s1421 = ssub.s32 256, 256
      %1422 = vsyncadd [#allocation10], %s1421
      %s1423 = sshll.u32 [#allocation9], 4
      %s1424 = int_to_ptr.vmem [resolvable:$true] %s1423
      %1429 = dma.vmem_to_hbm [thread:$0]  %s1424, 256, %s4, [#allocation10], 128, 128, 8
    $region33: #{tpu_custom_call.1} parent=1 // pred_fallthru
      _
    // Predicated region
    $region34: #{tpu_custom_call.1} parent=1 // pred_check
      _
    $region35: #{tpu_custom_call.1} parent=1 // pred_check_branch
      %1431 = sbr.rel (0) target = $region37
    $region36: #{tpu_custom_call.1} parent=1 // pred_region
      %1432 = dma.done [#allocation4], 256
    $region37: #{tpu_custom_call.1} parent=1 // pred_fallthru
      _
    // Predicated region
    $region38: #{tpu_custom_call.1} parent=1 // pred_check
      _
    $region39: #{tpu_custom_call.1} parent=1 // pred_check_branch
      %1434 = sbr.rel (0) target = $region41
    $region40: #{tpu_custom_call.1} parent=1 // pred_region
      %1435 = dma.done [#allocation10], 256
    $region41: #{tpu_custom_call.1} parent=1 // pred_fallthru
      _
    %1436 = vsyncpa [#allocation3], 1
    %1437 = vsyncpa [#allocation6], 1
    %1438 = vsyncpa [#allocation4], 1
    %1439 = vsyncpa [#allocation10], 1

</llo_original>
